<compile_context>
chip_gen: v7x
topology: tpu7x:2x2x1
jax: 0.10.0
libtpu: 0.0.40
codegen_flags: <defaults>
</compile_context>

<pallas_src>
import functools

import numpy as np
import jax
import jax.numpy as jnp
from jax.experimental import pallas as pl
from jax.experimental.pallas import tpu as pltpu

# ---------------- hyperparameters (ModelParams, nb_erb = 32) ----------------
CONV_CH    = 16                         # p.conv_ch (layer_width); wf = 1
NB_ERB     = 32                         # p.nb_erb (divisible by 8)
EMB_HIDDEN = 256                        # p.emb_hidden_dim
EMB_WIDTH  = CONV_CH                    # layer_width * wf**2
EMB_DIM    = EMB_WIDTH * (NB_ERB // 4)  # 128
F3 = NB_ERB // 4                        # freq bins of e3 / e2  (8)
F1 = NB_ERB // 2                        # freq bins of e1       (16)
F0 = NB_ERB                             # freq bins of e0       (32)
OUT_LANES = 128                         # final projection padded 32 -> 128 lanes
EPS = 1e-5                              # BatchNorm2d default eps

PARAM_ORDER = ["wfc", "bfc",
               "s3", "t3", "M3", "b3",
               "s2", "t2", "M2", "b2",
               "s1", "t1", "M1", "b1",
               "s0", "t0", "M0", "b0"]
MATMUL_PARAMS = {"wfc", "M3", "M2", "M1", "M0"}            # bf16 MXU operands
SCALE_PARAMS  = {"s3", "t3", "s2", "t2", "s1", "t1", "s0", "t0"}  # elementwise dtype


# ------------------------------- Pallas kernel -------------------------------
def decoder_kernel(emb_ref, e3_ref, e2_ref, e1_ref, e0_ref,
                   wfc_ref, bfc_ref,
                   s3_ref, t3_ref, M3_ref, b3_ref,
                   s2_ref, t2_ref, M2_ref, b2_ref,
                   s1_ref, t1_ref, M1_ref, b1_ref,
                   s0_ref, t0_ref, M0_ref, b0_ref,
                   out_ref, *, ew_dtype):
    def dot(a, m_ref):
        # bf16 x bf16 MXU matmul with f32 accumulation.
        return jnp.dot(a.astype(jnp.bfloat16), m_ref[...],
                       preferred_element_type=jnp.float32)

    def act(v):
        # ReLU, then cast to the elementwise compute dtype (bf16 on v6e/v7x,
        # f32 on v5e whose VPU has no bf16 lanes).
        return jnp.maximum(v, 0.0).astype(ew_dtype)

    def pconv(e_ref, s_ref, t_ref):
        # Depthwise 1x1 conv + folded BatchNorm + ReLU: per-lane scale/bias (VPU).
        return act(e_ref[...].astype(ew_dtype) * s_ref[...] + t_ref[...])

    # fc_emb: GroupedLinear(groups=1) == Linear(256 -> 128), then ReLU.
    h = act(dot(emb_ref[...], wfc_ref) + bfc_ref[...])              # (tbt, 128)

    # e3 path: conv3p + emb, then convt3 (depthwise (1,3) conv, pad 1, BN, ReLU)
    # as a block-diagonal matmul.
    x = pconv(e3_ref, s3_ref, t3_ref) + h
    x = act(dot(x, M3_ref) + b3_ref[...])                           # (tbt, 128)

    # e2 path: conv2p + x, then convt2 (depthwise ConvTranspose2d k=(1,3),
    # stride (1,2), pad (0,1), out_pad (0,1), BN, ReLU): freq 8 -> 16.
    x = pconv(e2_ref, s2_ref, t2_ref) + x
    x = act(dot(x, M2_ref) + b2_ref[...])                           # (tbt, 256)

    # e1 path: conv1p + x, then convt1: freq 16 -> 32.
    x = pconv(e1_ref, s1_ref, t1_ref) + x
    x = act(dot(x, M1_ref) + b1_ref[...])                           # (tbt, 512)

    # e0 path: conv0p + x, then conv0_out (Conv2d 16->1, k=(1,3), pad (0,1), bias)
    # zero-padded to 128 output lanes, followed by Sigmoid.
    x = pconv(e0_ref, s0_ref, t0_ref) + x
    y = dot(x, M0_ref) + b0_ref[...]                                # (tbt, 128) f32
    # sigmoid(y) == 0.5*tanh(0.5*y) + 0.5 : single exact EUP op.
    out_ref[...] = (0.5 * jnp.tanh(0.5 * y) + 0.5).astype(out_ref.dtype)


# ------------------------ generation-aware sizing helpers ----------------------
def _round_up(x, m):
    return (x + m - 1) // m * m


def _tpu_generation_info():
    """Returns (vmem_limit_bytes, num_tensorcores, bf16_elementwise)."""
    vmem_cap = 64 * 1024 * 1024               # conservative (v7x) physical floor
    try:
        vmem_cap = int(pltpu.get_tpu_info().vmem_capacity_bytes)
    except Exception:
        pass
    num_cores, bf16_ew = 1, True
    try:
        kind = jax.devices()[0].device_kind.lower()
        if "v7" in kind:
            num_cores = 2                      # megacore: 2 TCs share the grid
        if "v5 lite" in kind or "v5e" in kind or "v5litepod" in kind:
            bf16_ew = False                    # v5e VPU: keep elementwise in f32
    except Exception:
        pass
    # Leave ~25% of physical VMEM for compiler-internal scratch (matters on v7x).
    vmem_limit = max(32 * 1024 * 1024, (vmem_cap * 3) // 4)
    return vmem_limit, num_cores, bf16_ew


def _pick_row_tile(bt, requested, num_cores):
    """Row tile: multiple of 16 (bf16 sublane packing), large enough to amortize
    the ~0.35 us fixed per-step pipeline cost, capped so large inputs still give
    each TensorCore >= ~4 grid steps of DMA/compute overlap (8 steps total on
    v7x), but never forced below the 256-row amortization floor."""
    tile = min(requested, _round_up(bt, 16))          # never bigger than the input
    min_steps = 4 * num_cores
    cap = _round_up(-(-bt // min_steps), 16)          # >= min_steps grid steps
    tile = min(tile, max(cap, 256))
    return max(16, (tile // 16) * 16)


# --------------------------------- wrapper ------------------------------------
def erb_decoder_pallas(emb, e3, e2, e1, e0, ops, tbt=1024):
    """emb: (b, t, 256); e*: NCHW (b, C, t, F).  Returns (b, 1, t, NB_ERB) f32."""
    b, _, t, _ = e3.shape
    bt = b * t

    vmem_limit, num_cores, bf16_ew = _tpu_generation_info()
    ew_dtype = jnp.bfloat16 if bf16_ew else jnp.float32
    tbt = _pick_row_tile(bt, tbt, num_cores)
    bt_pad = _round_up(bt, tbt)

    # TODO(synk): fuse/eliminate this extra HBM pass (encoder should emit the
    # (bt, C*F) bf16 layout directly, or use allow_input_fusion).
    def flat(x):  # (b,C,t,F) -> (bt_pad, C*F) bf16, channel-major / freq-minor
        bb, c, tt, f = x.shape
        y = jnp.transpose(x.astype(jnp.bfloat16), (0, 2, 1, 3)).reshape(bb * tt, c * f)
        return jnp.pad(y, ((0, bt_pad - bt), (0, 0)))

    emb_f = jnp.pad(emb.astype(jnp.bfloat16).reshape(bt, EMB_HIDDEN),
                    ((0, bt_pad - bt), (0, 0)))
    e3f, e2f, e1f, e0f = flat(e3), flat(e2), flat(e1), flat(e0)

    def row_spec(d):
        return pl.BlockSpec((tbt, d), lambda i: (i, 0))

    def full_spec(arr):
        # Grid-invariant parameter block: constant index_map -> DMA'd once, not
        # refetched each grid step.
        return pl.BlockSpec(arr.shape, lambda i: (0, 0))

    def pdtype(k):
        if k in MATMUL_PARAMS:
            return jnp.bfloat16
        if k in SCALE_PARAMS:
            return ew_dtype
        return jnp.float32          # biases: added to f32 MXU accumulators

    params = [jnp.asarray(ops[k], pdtype(k)) for k in PARAM_ORDER]

    in_specs = ([row_spec(EMB_HIDDEN),
                 row_spec(CONV_CH * F3), row_spec(CONV_CH * F3),
                 row_spec(CONV_CH * F1), row_spec(CONV_CH * F0)]
                + [full_spec(p) for p in params])

    out = pl.pallas_call(
        functools.partial(decoder_kernel, ew_dtype=ew_dtype),
        # bf16 output (sigmoid in [0,1]) halves writeback, stays 128-lane dense.
        out_shape=jax.ShapeDtypeStruct((bt_pad, OUT_LANES), jnp.bfloat16),
        grid_spec=pltpu.PrefetchScalarGridSpec(
            num_scalar_prefetch=0,
            grid=(bt_pad // tbt,),
            in_specs=in_specs,
            out_specs=row_spec(OUT_LANES)),
        compiler_params=pltpu.CompilerParams(
            dimension_semantics=("parallel",),
            # At tbt=1024: ~2.5 MB bf16 inputs/step (x2 buffers) + ~1.1 MB weights
            # + ~0.5 MB output buffers + a few MB live activations -> well within
            # the 75%-of-physical budget on every generation.
            vmem_limit_bytes=vmem_limit),
    )(emb_f, e3f, e2f, e1f, e0f, *params)

    m = out[:bt, :F0].astype(jnp.float32)                 # drop row/lane padding
    return m.reshape(b, t, 1, F0).transpose(0, 2, 1, 3)   # -> (b, 1, t, nb_erb)


# ------------------- parameter setup / conv -> matrix glue --------------------
def dw_conv_matrix(w, f):
    """Depthwise Conv2d k=(1,3), pad=(0,1) as block-diag (C*f, C*f) matrix. w: (C,3)."""
    c = w.shape[0]
    m = np.zeros((c * f, c * f), np.float32)
    for ch in range(c):
        for fo in range(f):
            for j in range(3):
                fi = fo - 1 + j
                if 0 <= fi < f:
                    m[ch * f + fi, ch * f + fo] += w[ch, j]
    return m


def dw_convt_matrix(w, f_in):
    """Depthwise ConvTranspose2d k=(1,3), stride=(1,2), pad=(0,1), out_pad=(0,1)
    as block-diag (C*f_in, C*2*f_in) matrix. w: (C,3)."""
    c = w.shape[0]
    f_out = 2 * f_in
    m = np.zeros((c * f_in, c * f_out), np.float32)
    for ch in range(c):
        for fi in range(f_in):
            for j in range(3):
                fo = fi * 2 - 1 + j
                if 0 <= fo < f_out:
                    m[ch * f_in + fi, ch * f_out + fo] += w[ch, j]
    return m


def conv_out_matrix(w, f):
    """Conv2d(C,1,k=(1,3),pad=(0,1)) as (C*f, f) matrix. w: (1,C,1,3)."""
    c = w.shape[1]
    m = np.zeros((c * f, f), np.float32)
    for ch in range(c):
        for fo in range(f):
            for j in range(3):
                fi = fo - 1 + j
                if 0 <= fi < f:
                    m[ch * f + fi, fo] += w[0, ch, 0, j]
    return m


def fold_bn(bnp):
    g, be, mu, var = (np.asarray(x, np.float32) for x in bnp)
    a = g / np.sqrt(var + EPS)
    b = be - mu * a
    return a, b


def build_kernel_operands(P):
    ops = {}
    ops["wfc"] = np.asarray(P["fc_w"], np.float32).T.copy()        # (256,128)
    ops["bfc"] = np.asarray(P["fc_b"], np.float32)[None, :]        # (1,128)

    def pconv_ops(wkey, bnkey, f):
        a, b = fold_bn(P[bnkey])
        s = np.repeat(np.asarray(P[wkey], np.float32) * a, f)[None, :]
        t = np.repeat(b, f)[None, :]
        return s.astype(np.float32), t.astype(np.float32)

    def conv_block_ops(wkey, bnkey, f_in, transposed):
        a, b = fold_bn(P[bnkey])
        w = np.asarray(P[wkey], np.float32)
        if transposed:
            m = dw_convt_matrix(w, f_in)
            f_out = 2 * f_in
        else:
            m = dw_conv_matrix(w, f_in)
            f_out = f_in
        m = m * np.repeat(a, f_out)[None, :]
        return m.astype(np.float32), np.repeat(b, f_out)[None, :].astype(np.float32)

    ops["s3"], ops["t3"] = pconv_ops("w3p", "bn3p", F3)
    ops["M3"], ops["b3"] = conv_block_ops("wt3", "bnt3", F3, transposed=False)
    ops["s2"], ops["t2"] = pconv_ops("w2p", "bn2p", F3)
    ops["M2"], ops["b2"] = conv_block_ops("wt2", "bnt2", F3, transposed=True)
    ops["s1"], ops["t1"] = pconv_ops("w1p", "bn1p", F1)
    ops["M1"], ops["b1"] = conv_block_ops("wt1", "bnt1", F1, transposed=True)
    ops["s0"], ops["t0"] = pconv_ops("w0p", "bn0p", F0)

    # Output projection zero-padded to 128 lanes for lane-dense (unmasked) stores.
    m0 = conv_out_matrix(np.asarray(P["w0o"], np.float32), F0)     # (512, 32)
    m0p = np.zeros((m0.shape[0], OUT_LANES), np.float32)
    m0p[:, :F0] = m0
    ops["M0"] = m0p
    b0p = np.zeros((1, OUT_LANES), np.float32)
    b0p[:, :F0] = float(P["b0o"])
    ops["b0"] = b0p
    return ops


# --------------------------- pure-JAX reference -------------------------------
def ref_forward(emb, e3, e2, e1, e0, P):
    relu = jax.nn.relu

    def bn(x, g, be, mu, var):
        a = g / jnp.sqrt(var + EPS)
        b = be - mu * a
        return x * a[None, :, None, None] + b[None, :, None, None]

    def pconv(x, w, bnp):
        return relu(bn(x * w[None, :, None, None], *bnp))

    def dwconv3(x, w, bnp):
        f = x.shape[-1]
        xp = jnp.pad(x, ((0, 0), (0, 0), (0, 0), (1, 1)))
        y = sum(w[None, :, j, None, None] * xp[..., j:j + f] for j in range(3))
        return relu(bn(y, *bnp))

    def dwconvt3s2(x, w, bnp):
        f = x.shape[-1]
        xn = jnp.pad(x[..., 1:], ((0, 0), (0, 0), (0, 0), (0, 1)))
        y_even = w[None, :, 1, None, None] * x
        y_odd = w[None, :, 2, None, None] * x + w[None, :, 0, None, None] * xn
        y = jnp.stack([y_even, y_odd], axis=-1).reshape(x.shape[:-1] + (2 * f,))
        return relu(bn(y, *bnp))

    def conv_out(x, w, bias):
        f = x.shape[-1]
        xp = jnp.pad(x, ((0, 0), (0, 0), (0, 0), (1, 1)))
        y = sum(jnp.einsum('c,bctf->btf', w[0, :, 0, j], xp[..., j:j + f]) for j in range(3))
        return jax.nn.sigmoid(y[:, None] + bias)

    b, _, t, f8 = e3.shape
    h = relu(emb @ P["fc_w"].T + P["fc_b"])
    h = h.reshape(b, t, -1, f8).transpose(0, 2, 1, 3)
    x3 = dwconv3(pconv(e3, P["w3p"], P["bn3p"]) + h, P["wt3"], P["bnt3"])
    x2 = dwconvt3s2(pconv(e2, P["w2p"], P["bn2p"]) + x3, P["wt2"], P["bnt2"])
    x1 = dwconvt3s2(pconv(e1, P["w1p"], P["bn1p"]) + x2, P["wt1"], P["bnt1"])
    m = conv_out(pconv(e0, P["w0p"], P["bn0p"]) + x1, P["w0o"], P["b0o"])
    return m


# ------------------------------------ main ------------------------------------
if __name__ == "__main__":
    keys = iter(jax.random.split(jax.random.PRNGKey(0), 64))
    nxt = lambda: next(keys)

    def rnorm(shape, scale):
        return scale * jax.random.normal(nxt(), shape, dtype=jnp.float32)

    def runif(shape, lo, hi):
        return jax.random.uniform(nxt(), shape, dtype=jnp.float32, minval=lo, maxval=hi)

    def bn_params(c):
        return (runif((c,), 0.8, 1.2),   # gamma
                rnorm((c,), 0.1),        # beta
                rnorm((c,), 0.1),        # running_mean
                runif((c,), 0.5, 1.5))   # running_var

    C = CONV_CH
    P = dict(
        fc_w=rnorm((EMB_DIM, EMB_HIDDEN), 0.05), fc_b=rnorm((EMB_DIM,), 0.05),
        w3p=rnorm((C,), 0.3), bn3p=bn_params(C),
        wt3=rnorm((C, 3), 0.3), bnt3=bn_params(C),
        w2p=rnorm((C,), 0.3), bn2p=bn_params(C),
        wt2=rnorm((C, 3), 0.3), bnt2=bn_params(C),
        w1p=rnorm((C,), 0.3), bn1p=bn_params(C),
        wt1=rnorm((C, 3), 0.3), bnt1=bn_params(C),
        w0p=rnorm((C,), 0.3), bn0p=bn_params(C),
        w0o=rnorm((1, C, 1, 3), 0.2), b0o=jnp.float32(0.1),
    )
    ops = build_kernel_operands(P)

    # Inputs (b=2, t=20): emb (b,t,256); encoder maps in NCHW.
    # tbt is explicitly capped at 16 here so the tiny test (bt=40) still exercises
    # a multi-step grid (3 steps), row padding (40 -> 48 rows) and grid-invariant
    # parameter blocks; the production default is tbt=1024 (adaptively capped).
    b, t = 2, 20
    emb = jax.random.normal(nxt(), (b, t, EMB_HIDDEN), dtype=jnp.float32)
    e3 = jax.random.normal(nxt(), (b, C, t, F3), dtype=jnp.float32)
    e2 = jax.random.normal(nxt(), (b, C, t, F3), dtype=jnp.float32)
    e1 = jax.random.normal(nxt(), (b, C, t, F1), dtype=jnp.float32)
    e0 = jax.random.normal(nxt(), (b, C, t, F0), dtype=jnp.float32)

    m_pallas = jax.block_until_ready(erb_decoder_pallas(emb, e3, e2, e1, e0, ops, tbt=16))
    m_ref = jax.block_until_ready(ref_forward(emb, e3, e2, e1, e0, P))

    assert m_pallas.shape == (b, 1, t, NB_ERB)
    # Tolerance dominated by bf16 matmul operands / bf16 intermediates / bf16
    # output (sigmoid itself is exact: single tanh, f32 logits).
    np.testing.assert_allclose(np.asarray(m_pallas), np.asarray(m_ref),
                               atol=2e-2, rtol=2e-2)
    print("KERNEL_OK")
</pallas_src>

<mosaic_0001>
module attributes {stable_mosaic.version = 11 : i64} {
  func.func @decoder_kernel(%arg0: i32, %arg1: memref<16x256xbf16, #tpu.memory_space<vmem>>, %arg2: memref<16x128xbf16, #tpu.memory_space<vmem>>, %arg3: memref<16x128xbf16, #tpu.memory_space<vmem>>, %arg4: memref<16x256xbf16, #tpu.memory_space<vmem>>, %arg5: memref<16x512xbf16, #tpu.memory_space<vmem>>, %arg6: memref<256x128xbf16, #tpu.memory_space<vmem>>, %arg7: memref<1x128xf32, #tpu.memory_space<vmem>>, %arg8: memref<1x128xbf16, #tpu.memory_space<vmem>>, %arg9: memref<1x128xbf16, #tpu.memory_space<vmem>>, %arg10: memref<128x128xbf16, #tpu.memory_space<vmem>>, %arg11: memref<1x128xf32, #tpu.memory_space<vmem>>, %arg12: memref<1x128xbf16, #tpu.memory_space<vmem>>, %arg13: memref<1x128xbf16, #tpu.memory_space<vmem>>, %arg14: memref<128x256xbf16, #tpu.memory_space<vmem>>, %arg15: memref<1x256xf32, #tpu.memory_space<vmem>>, %arg16: memref<1x256xbf16, #tpu.memory_space<vmem>>, %arg17: memref<1x256xbf16, #tpu.memory_space<vmem>>, %arg18: memref<256x512xbf16, #tpu.memory_space<vmem>>, %arg19: memref<1x512xf32, #tpu.memory_space<vmem>>, %arg20: memref<1x512xbf16, #tpu.memory_space<vmem>>, %arg21: memref<1x512xbf16, #tpu.memory_space<vmem>>, %arg22: memref<512x128xbf16, #tpu.memory_space<vmem>>, %arg23: memref<1x128xf32, #tpu.memory_space<vmem>>, %arg24: memref<16x128xbf16, #tpu.memory_space<vmem>>) attributes {dimension_semantics = [#tpu.dimension_semantics<parallel>], iteration_bounds = array<i64: 3>, scalar_prefetch = 0 : i64, scratch_operands = 0 : i64, tpu.core_type = #tpu.core_type<tc>, window_params = [{transform_indices = @transform_0, window_bounds = array<i64: 16, 256>}, {transform_indices = @transform_1, window_bounds = array<i64: 16, 128>}, {transform_indices = @transform_2, window_bounds = array<i64: 16, 128>}, {transform_indices = @transform_3, window_bounds = array<i64: 16, 256>}, {transform_indices = @transform_4, window_bounds = array<i64: 16, 512>}, {pipeline_mode = #tpu.pipeline_mode<synchronous>, transform_indices = @transform_5, window_bounds = array<i64: 256, 128>}, {pipeline_mode = #tpu.pipeline_mode<synchronous>, transform_indices = @transform_6, window_bounds = array<i64: 1, 128>}, {pipeline_mode = #tpu.pipeline_mode<synchronous>, transform_indices = @transform_7, window_bounds = array<i64: 1, 128>}, {pipeline_mode = #tpu.pipeline_mode<synchronous>, transform_indices = @transform_8, window_bounds = array<i64: 1, 128>}, {pipeline_mode = #tpu.pipeline_mode<synchronous>, transform_indices = @transform_9, window_bounds = array<i64: 128, 128>}, {pipeline_mode = #tpu.pipeline_mode<synchronous>, transform_indices = @transform_10, window_bounds = array<i64: 1, 128>}, {pipeline_mode = #tpu.pipeline_mode<synchronous>, transform_indices = @transform_11, window_bounds = array<i64: 1, 128>}, {pipeline_mode = #tpu.pipeline_mode<synchronous>, transform_indices = @transform_12, window_bounds = array<i64: 1, 128>}, {pipeline_mode = #tpu.pipeline_mode<synchronous>, transform_indices = @transform_13, window_bounds = array<i64: 128, 256>}, {pipeline_mode = #tpu.pipeline_mode<synchronous>, transform_indices = @transform_14, window_bounds = array<i64: 1, 256>}, {pipeline_mode = #tpu.pipeline_mode<synchronous>, transform_indices = @transform_15, window_bounds = array<i64: 1, 256>}, {pipeline_mode = #tpu.pipeline_mode<synchronous>, transform_indices = @transform_16, window_bounds = array<i64: 1, 256>}, {pipeline_mode = #tpu.pipeline_mode<synchronous>, transform_indices = @transform_17, window_bounds = array<i64: 256, 512>}, {pipeline_mode = #tpu.pipeline_mode<synchronous>, transform_indices = @transform_18, window_bounds = array<i64: 1, 512>}, {pipeline_mode = #tpu.pipeline_mode<synchronous>, transform_indices = @transform_19, window_bounds = array<i64: 1, 512>}, {pipeline_mode = #tpu.pipeline_mode<synchronous>, transform_indices = @transform_20, window_bounds = array<i64: 1, 512>}, {pipeline_mode = #tpu.pipeline_mode<synchronous>, transform_indices = @transform_21, window_bounds = array<i64: 512, 128>}, {pipeline_mode = #tpu.pipeline_mode<synchronous>, transform_indices = @transform_22, window_bounds = array<i64: 1, 128>}, {transform_indices = @transform_23, window_bounds = array<i64: 16, 128>}]} {
    %c0 = arith.constant 0 : index
    %c0_0 = arith.constant 0 : index
    %0 = vector.load %arg1[%c0, %c0_0] : memref<16x256xbf16, #tpu.memory_space<vmem>>, vector<16x256xbf16>
    %c0_1 = arith.constant 0 : index
    %c0_2 = arith.constant 0 : index
    %1 = vector.load %arg6[%c0_1, %c0_2] : memref<256x128xbf16, #tpu.memory_space<vmem>>, vector<256x128xbf16>
    %cst = arith.constant dense<0.000000e+00> : vector<16x128xf32>
    %2 = tpu.matmul %0, %1, %cst {dimension_numbers = #tpu.dot_dimension_numbers<[1], [0], [0], [1], [0, 0, 1, 1], [], []>} : vector<16x256xbf16>, vector<256x128xbf16>, vector<16x128xf32> -> vector<16x128xf32>
    %c0_3 = arith.constant 0 : index
    %c0_4 = arith.constant 0 : index
    %3 = vector.load %arg7[%c0_3, %c0_4] : memref<1x128xf32, #tpu.memory_space<vmem>>, vector<1x128xf32>
    %4 = vector.broadcast %3 : vector<1x128xf32> to vector<16x128xf32>
    %5 = arith.addf %2, %4 : vector<16x128xf32>
    %cst_5 = arith.constant 0.000000e+00 : f32
    %6 = vector.broadcast %cst_5 : f32 to vector<16x128xf32>
    %7 = arith.maximumf %5, %6 : vector<16x128xf32>
    %8 = arith.truncf %7 : vector<16x128xf32> to vector<16x128xbf16>
    %c0_6 = arith.constant 0 : index
    %c0_7 = arith.constant 0 : index
    %9 = vector.load %arg2[%c0_6, %c0_7] : memref<16x128xbf16, #tpu.memory_space<vmem>>, vector<16x128xbf16>
    %c0_8 = arith.constant 0 : index
    %c0_9 = arith.constant 0 : index
    %10 = vector.load %arg8[%c0_8, %c0_9] : memref<1x128xbf16, #tpu.memory_space<vmem>>, vector<1x128xbf16>
    %11 = vector.broadcast %10 : vector<1x128xbf16> to vector<16x128xbf16>
    %12 = arith.mulf %9, %11 : vector<16x128xbf16>
    %c0_10 = arith.constant 0 : index
    %c0_11 = arith.constant 0 : index
    %13 = vector.load %arg9[%c0_10, %c0_11] : memref<1x128xbf16, #tpu.memory_space<vmem>>, vector<1x128xbf16>
    %14 = vector.broadcast %13 : vector<1x128xbf16> to vector<16x128xbf16>
    %15 = arith.addf %12, %14 : vector<16x128xbf16>
    %cst_12 = arith.constant 0.000000e+00 : bf16
    %16 = vector.broadcast %cst_12 : bf16 to vector<16x128xbf16>
    %17 = arith.maximumf %15, %16 : vector<16x128xbf16>
    %18 = arith.addf %17, %8 : vector<16x128xbf16>
    %c0_13 = arith.constant 0 : index
    %c0_14 = arith.constant 0 : index
    %19 = vector.load %arg10[%c0_13, %c0_14] : memref<128x128xbf16, #tpu.memory_space<vmem>>, vector<128x128xbf16>
    %cst_15 = arith.constant dense<0.000000e+00> : vector<16x128xf32>
    %20 = tpu.matmul %18, %19, %cst_15 {dimension_numbers = #tpu.dot_dimension_numbers<[1], [0], [0], [1], [0, 0, 1, 1], [], []>} : vector<16x128xbf16>, vector<128x128xbf16>, vector<16x128xf32> -> vector<16x128xf32>
    %c0_16 = arith.constant 0 : index
    %c0_17 = arith.constant 0 : index
    %21 = vector.load %arg11[%c0_16, %c0_17] : memref<1x128xf32, #tpu.memory_space<vmem>>, vector<1x128xf32>
    %22 = vector.broadcast %21 : vector<1x128xf32> to vector<16x128xf32>
    %23 = arith.addf %20, %22 : vector<16x128xf32>
    %cst_18 = arith.constant 0.000000e+00 : f32
    %24 = vector.broadcast %cst_18 : f32 to vector<16x128xf32>
    %25 = arith.maximumf %23, %24 : vector<16x128xf32>
    %26 = arith.truncf %25 : vector<16x128xf32> to vector<16x128xbf16>
    %c0_19 = arith.constant 0 : index
    %c0_20 = arith.constant 0 : index
    %27 = vector.load %arg3[%c0_19, %c0_20] : memref<16x128xbf16, #tpu.memory_space<vmem>>, vector<16x128xbf16>
    %c0_21 = arith.constant 0 : index
    %c0_22 = arith.constant 0 : index
    %28 = vector.load %arg12[%c0_21, %c0_22] : memref<1x128xbf16, #tpu.memory_space<vmem>>, vector<1x128xbf16>
    %29 = vector.broadcast %28 : vector<1x128xbf16> to vector<16x128xbf16>
    %30 = arith.mulf %27, %29 : vector<16x128xbf16>
    %c0_23 = arith.constant 0 : index
    %c0_24 = arith.constant 0 : index
    %31 = vector.load %arg13[%c0_23, %c0_24] : memref<1x128xbf16, #tpu.memory_space<vmem>>, vector<1x128xbf16>
    %32 = vector.broadcast %31 : vector<1x128xbf16> to vector<16x128xbf16>
    %33 = arith.addf %30, %32 : vector<16x128xbf16>
    %cst_25 = arith.constant 0.000000e+00 : bf16
    %34 = vector.broadcast %cst_25 : bf16 to vector<16x128xbf16>
    %35 = arith.maximumf %33, %34 : vector<16x128xbf16>
    %36 = arith.addf %35, %26 : vector<16x128xbf16>
    %c0_26 = arith.constant 0 : index
    %c0_27 = arith.constant 0 : index
    %37 = vector.load %arg14[%c0_26, %c0_27] : memref<128x256xbf16, #tpu.memory_space<vmem>>, vector<128x256xbf16>
    %cst_28 = arith.constant dense<0.000000e+00> : vector<16x256xf32>
    %38 = tpu.matmul %36, %37, %cst_28 {dimension_numbers = #tpu.dot_dimension_numbers<[1], [0], [0], [1], [0, 0, 1, 1], [], []>} : vector<16x128xbf16>, vector<128x256xbf16>, vector<16x256xf32> -> vector<16x256xf32>
    %c0_29 = arith.constant 0 : index
    %c0_30 = arith.constant 0 : index
    %39 = vector.load %arg15[%c0_29, %c0_30] : memref<1x256xf32, #tpu.memory_space<vmem>>, vector<1x256xf32>
    %40 = vector.broadcast %39 : vector<1x256xf32> to vector<16x256xf32>
    %41 = arith.addf %38, %40 : vector<16x256xf32>
    %cst_31 = arith.constant 0.000000e+00 : f32
    %42 = vector.broadcast %cst_31 : f32 to vector<16x256xf32>
    %43 = arith.maximumf %41, %42 : vector<16x256xf32>
    %44 = arith.truncf %43 : vector<16x256xf32> to vector<16x256xbf16>
    %c0_32 = arith.constant 0 : index
    %c0_33 = arith.constant 0 : index
    %45 = vector.load %arg4[%c0_32, %c0_33] : memref<16x256xbf16, #tpu.memory_space<vmem>>, vector<16x256xbf16>
    %c0_34 = arith.constant 0 : index
    %c0_35 = arith.constant 0 : index
    %46 = vector.load %arg16[%c0_34, %c0_35] : memref<1x256xbf16, #tpu.memory_space<vmem>>, vector<1x256xbf16>
    %47 = vector.broadcast %46 : vector<1x256xbf16> to vector<16x256xbf16>
    %48 = arith.mulf %45, %47 : vector<16x256xbf16>
    %c0_36 = arith.constant 0 : index
    %c0_37 = arith.constant 0 : index
    %49 = vector.load %arg17[%c0_36, %c0_37] : memref<1x256xbf16, #tpu.memory_space<vmem>>, vector<1x256xbf16>
    %50 = vector.broadcast %49 : vector<1x256xbf16> to vector<16x256xbf16>
    %51 = arith.addf %48, %50 : vector<16x256xbf16>
    %cst_38 = arith.constant 0.000000e+00 : bf16
    %52 = vector.broadcast %cst_38 : bf16 to vector<16x256xbf16>
    %53 = arith.maximumf %51, %52 : vector<16x256xbf16>
    %54 = arith.addf %53, %44 : vector<16x256xbf16>
    %c0_39 = arith.constant 0 : index
    %c0_40 = arith.constant 0 : index
    %55 = vector.load %arg18[%c0_39, %c0_40] : memref<256x512xbf16, #tpu.memory_space<vmem>>, vector<256x512xbf16>
    %cst_41 = arith.constant dense<0.000000e+00> : vector<16x512xf32>
    %56 = tpu.matmul %54, %55, %cst_41 {dimension_numbers = #tpu.dot_dimension_numbers<[1], [0], [0], [1], [0, 0, 1, 1], [], []>} : vector<16x256xbf16>, vector<256x512xbf16>, vector<16x512xf32> -> vector<16x512xf32>
    %c0_42 = arith.constant 0 : index
    %c0_43 = arith.constant 0 : index
    %57 = vector.load %arg19[%c0_42, %c0_43] : memref<1x512xf32, #tpu.memory_space<vmem>>, vector<1x512xf32>
    %58 = vector.broadcast %57 : vector<1x512xf32> to vector<16x512xf32>
    %59 = arith.addf %56, %58 : vector<16x512xf32>
    %cst_44 = arith.constant 0.000000e+00 : f32
    %60 = vector.broadcast %cst_44 : f32 to vector<16x512xf32>
    %61 = arith.maximumf %59, %60 : vector<16x512xf32>
    %62 = arith.truncf %61 : vector<16x512xf32> to vector<16x512xbf16>
    %c0_45 = arith.constant 0 : index
    %c0_46 = arith.constant 0 : index
    %63 = vector.load %arg5[%c0_45, %c0_46] : memref<16x512xbf16, #tpu.memory_space<vmem>>, vector<16x512xbf16>
    %c0_47 = arith.constant 0 : index
    %c0_48 = arith.constant 0 : index
    %64 = vector.load %arg20[%c0_47, %c0_48] : memref<1x512xbf16, #tpu.memory_space<vmem>>, vector<1x512xbf16>
    %65 = vector.broadcast %64 : vector<1x512xbf16> to vector<16x512xbf16>
    %66 = arith.mulf %63, %65 : vector<16x512xbf16>
    %c0_49 = arith.constant 0 : index
    %c0_50 = arith.constant 0 : index
    %67 = vector.load %arg21[%c0_49, %c0_50] : memref<1x512xbf16, #tpu.memory_space<vmem>>, vector<1x512xbf16>
    %68 = vector.broadcast %67 : vector<1x512xbf16> to vector<16x512xbf16>
    %69 = arith.addf %66, %68 : vector<16x512xbf16>
    %cst_51 = arith.constant 0.000000e+00 : bf16
    %70 = vector.broadcast %cst_51 : bf16 to vector<16x512xbf16>
    %71 = arith.maximumf %69, %70 : vector<16x512xbf16>
    %72 = arith.addf %71, %62 : vector<16x512xbf16>
    %c0_52 = arith.constant 0 : index
    %c0_53 = arith.constant 0 : index
    %73 = vector.load %arg22[%c0_52, %c0_53] : memref<512x128xbf16, #tpu.memory_space<vmem>>, vector<512x128xbf16>
    %cst_54 = arith.constant dense<0.000000e+00> : vector<16x128xf32>
    %74 = tpu.matmul %72, %73, %cst_54 {dimension_numbers = #tpu.dot_dimension_numbers<[1], [0], [0], [1], [0, 0, 1, 1], [], []>} : vector<16x512xbf16>, vector<512x128xbf16>, vector<16x128xf32> -> vector<16x128xf32>
    %c0_55 = arith.constant 0 : index
    %c0_56 = arith.constant 0 : index
    %75 = vector.load %arg23[%c0_55, %c0_56] : memref<1x128xf32, #tpu.memory_space<vmem>>, vector<1x128xf32>
    %76 = vector.broadcast %75 : vector<1x128xf32> to vector<16x128xf32>
    %77 = arith.addf %74, %76 : vector<16x128xf32>
    %cst_57 = arith.constant 5.000000e-01 : f32
    %78 = vector.broadcast %cst_57 : f32 to vector<16x128xf32>
    %79 = arith.mulf %78, %77 : vector<16x128xf32>
    %80 = math.tanh %79 : vector<16x128xf32>
    %cst_58 = arith.constant 5.000000e-01 : f32
    %81 = vector.broadcast %cst_58 : f32 to vector<16x128xf32>
    %82 = arith.mulf %81, %80 : vector<16x128xf32>
    %cst_59 = arith.constant 5.000000e-01 : f32
    %83 = vector.broadcast %cst_59 : f32 to vector<16x128xf32>
    %84 = arith.addf %82, %83 : vector<16x128xf32>
    %85 = arith.truncf %84 : vector<16x128xf32> to vector<16x128xbf16>
    %c0_60 = arith.constant 0 : index
    %c0_61 = arith.constant 0 : index
    %86 = vector.load %arg24[%c0_60, %c0_61] : memref<16x128xbf16, #tpu.memory_space<vmem>>, vector<16x128xbf16>
    tpu.vector_store %arg24[%c0_60, %c0_61], %85 {strides = array<i32>} : memref<16x128xbf16, #tpu.memory_space<vmem>>, vector<16x128xbf16>,
    return
  }
  func.func @transform_0(%arg0: i32) -> (i32, i32) {
    %c0_i32 = arith.constant 0 : i32
    %c0_i32_0 = arith.constant 0 : i32
    return %arg0, %c0_i32 : i32, i32
  }
  func.func @transform_1(%arg0: i32) -> (i32, i32) {
    %c0_i32 = arith.constant 0 : i32
    %c0_i32_0 = arith.constant 0 : i32
    return %arg0, %c0_i32 : i32, i32
  }
  func.func @transform_2(%arg0: i32) -> (i32, i32) {
    %c0_i32 = arith.constant 0 : i32
    %c0_i32_0 = arith.constant 0 : i32
    return %arg0, %c0_i32 : i32, i32
  }
  func.func @transform_3(%arg0: i32) -> (i32, i32) {
    %c0_i32 = arith.constant 0 : i32
    %c0_i32_0 = arith.constant 0 : i32
    return %arg0, %c0_i32 : i32, i32
  }
  func.func @transform_4(%arg0: i32) -> (i32, i32) {
    %c0_i32 = arith.constant 0 : i32
    %c0_i32_0 = arith.constant 0 : i32
    return %arg0, %c0_i32 : i32, i32
  }
  func.func @transform_5(%arg0: i32) -> (i32, i32) {
    %c0_i32 = arith.constant 0 : i32
    %c0_i32_0 = arith.constant 0 : i32
    %c0_i32_1 = arith.constant 0 : i32
    return %c0_i32, %c0_i32_0 : i32, i32
  }
  func.func @transform_6(%arg0: i32) -> (i32, i32) {
    %c0_i32 = arith.constant 0 : i32
    %c0_i32_0 = arith.constant 0 : i32
    %c0_i32_1 = arith.constant 0 : i32
    return %c0_i32, %c0_i32_0 : i32, i32
  }
  func.func @transform_7(%arg0: i32) -> (i32, i32) {
    %c0_i32 = arith.constant 0 : i32
    %c0_i32_0 = arith.constant 0 : i32
    %c0_i32_1 = arith.constant 0 : i32
    return %c0_i32, %c0_i32_0 : i32, i32
  }
  func.func @transform_8(%arg0: i32) -> (i32, i32) {
    %c0_i32 = arith.constant 0 : i32
    %c0_i32_0 = arith.constant 0 : i32
    %c0_i32_1 = arith.constant 0 : i32
    return %c0_i32, %c0_i32_0 : i32, i32
  }
  func.func @transform_9(%arg0: i32) -> (i32, i32) {
    %c0_i32 = arith.constant 0 : i32
    %c0_i32_0 = arith.constant 0 : i32
    %c0_i32_1 = arith.constant 0 : i32
    return %c0_i32, %c0_i32_0 : i32, i32
  }
  func.func @transform_10(%arg0: i32) -> (i32, i32) {
    %c0_i32 = arith.constant 0 : i32
    %c0_i32_0 = arith.constant 0 : i32
    %c0_i32_1 = arith.constant 0 : i32
    return %c0_i32, %c0_i32_0 : i32, i32
  }
  func.func @transform_11(%arg0: i32) -> (i32, i32) {
    %c0_i32 = arith.constant 0 : i32
    %c0_i32_0 = arith.constant 0 : i32
    %c0_i32_1 = arith.constant 0 : i32
    return %c0_i32, %c0_i32_0 : i32, i32
  }
  func.func @transform_12(%arg0: i32) -> (i32, i32) {
    %c0_i32 = arith.constant 0 : i32
    %c0_i32_0 = arith.constant 0 : i32
    %c0_i32_1 = arith.constant 0 : i32
    return %c0_i32, %c0_i32_0 : i32, i32
  }
  func.func @transform_13(%arg0: i32) -> (i32, i32) {
    %c0_i32 = arith.constant 0 : i32
    %c0_i32_0 = arith.constant 0 : i32
    %c0_i32_1 = arith.constant 0 : i32
    return %c0_i32, %c0_i32_0 : i32, i32
  }
  func.func @transform_14(%arg0: i32) -> (i32, i32) {
    %c0_i32 = arith.constant 0 : i32
    %c0_i32_0 = arith.constant 0 : i32
    %c0_i32_1 = arith.constant 0 : i32
    return %c0_i32, %c0_i32_0 : i32, i32
  }
  func.func @transform_15(%arg0: i32) -> (i32, i32) {
    %c0_i32 = arith.constant 0 : i32
    %c0_i32_0 = arith.constant 0 : i32
    %c0_i32_1 = arith.constant 0 : i32
    return %c0_i32, %c0_i32_0 : i32, i32
  }
  func.func @transform_16(%arg0: i32) -> (i32, i32) {
    %c0_i32 = arith.constant 0 : i32
    %c0_i32_0 = arith.constant 0 : i32
    %c0_i32_1 = arith.constant 0 : i32
    return %c0_i32, %c0_i32_0 : i32, i32
  }
  func.func @transform_17(%arg0: i32) -> (i32, i32) {
    %c0_i32 = arith.constant 0 : i32
    %c0_i32_0 = arith.constant 0 : i32
    %c0_i32_1 = arith.constant 0 : i32
    return %c0_i32, %c0_i32_0 : i32, i32
  }
  func.func @transform_18(%arg0: i32) -> (i32, i32) {
    %c0_i32 = arith.constant 0 : i32
    %c0_i32_0 = arith.constant 0 : i32
    %c0_i32_1 = arith.constant 0 : i32
    return %c0_i32, %c0_i32_0 : i32, i32
  }
  func.func @transform_19(%arg0: i32) -> (i32, i32) {
    %c0_i32 = arith.constant 0 : i32
    %c0_i32_0 = arith.constant 0 : i32
    %c0_i32_1 = arith.constant 0 : i32
    return %c0_i32, %c0_i32_0 : i32, i32
  }
  func.func @transform_20(%arg0: i32) -> (i32, i32) {
    %c0_i32 = arith.constant 0 : i32
    %c0_i32_0 = arith.constant 0 : i32
    %c0_i32_1 = arith.constant 0 : i32
    return %c0_i32, %c0_i32_0 : i32, i32
  }
  func.func @transform_21(%arg0: i32) -> (i32, i32) {
    %c0_i32 = arith.constant 0 : i32
    %c0_i32_0 = arith.constant 0 : i32
    %c0_i32_1 = arith.constant 0 : i32
    return %c0_i32, %c0_i32_0 : i32, i32
  }
  func.func @transform_22(%arg0: i32) -> (i32, i32) {
    %c0_i32 = arith.constant 0 : i32
    %c0_i32_0 = arith.constant 0 : i32
    %c0_i32_1 = arith.constant 0 : i32
    return %c0_i32, %c0_i32_0 : i32, i32
  }
  func.func @transform_23(%arg0: i32) -> (i32, i32) {
    %c0_i32 = arith.constant 0 : i32
    %c0_i32_0 = arith.constant 0 : i32
    return %arg0, %c0_i32 : i32, i32
  }
}

</mosaic_0001>

<llo_original>
// kernel: tpu_custom_call.1
$region0: #{tpu_custom_call.1}
  #allocation0 [shape = 'u32[]', space=smem, size = 0x4, offset = 0x4, fixed_abs, tag = 'smem constant byte address 0x4 - core index']
  #allocation1 [shape = 'u32[144,128]{1,0:T(1,128)}', space=vmem, size = 0x12000, scoped, tag = 'internal scratch']
  %s0 = inlined_call_operand.hbm [shape: bf16[48,256], index: 0, kind: input, shape index: {}]
  %s1 = inlined_call_operand.hbm [shape: bf16[48,128], index: 1, kind: input, shape index: {}]
  %s2 = inlined_call_operand.hbm [shape: bf16[48,128], index: 2, kind: input, shape index: {}]
  %s3 = inlined_call_operand.hbm [shape: bf16[48,256], index: 3, kind: input, shape index: {}]
  %s4 = inlined_call_operand.hbm [shape: bf16[48,512], index: 4, kind: input, shape index: {}]
  %s5 = inlined_call_operand.hbm [shape: bf16[256,128], index: 5, kind: input, shape index: {}]
  %s6 = inlined_call_operand.vmem [shape: f32[1,128], index: 6, kind: input, shape index: {}]
  %s7 = inlined_call_operand.vmem [shape: bf16[1,128], index: 7, kind: input, shape index: {}]
  %s8 = inlined_call_operand.vmem [shape: bf16[1,128], index: 8, kind: input, shape index: {}]
  %s9 = inlined_call_operand.hbm [shape: bf16[128,128], index: 9, kind: input, shape index: {}]
  %s10 = inlined_call_operand.vmem [shape: f32[1,128], index: 10, kind: input, shape index: {}]
  %s11 = inlined_call_operand.vmem [shape: bf16[1,128], index: 11, kind: input, shape index: {}]
  %s12 = inlined_call_operand.vmem [shape: bf16[1,128], index: 12, kind: input, shape index: {}]
  %s13 = inlined_call_operand.hbm [shape: bf16[128,256], index: 13, kind: input, shape index: {}]
  %s14 = inlined_call_operand.vmem [shape: f32[1,256], index: 14, kind: input, shape index: {}]
  %s15 = inlined_call_operand.vmem [shape: bf16[1,256], index: 15, kind: input, shape index: {}]
  %s16 = inlined_call_operand.vmem [shape: bf16[1,256], index: 16, kind: input, shape index: {}]
  %s17 = inlined_call_operand.hbm [shape: bf16[256,512], index: 17, kind: input, shape index: {}]
  %s18 = inlined_call_operand.vmem [shape: f32[1,512], index: 18, kind: input, shape index: {}]
  %s19 = inlined_call_operand.vmem [shape: bf16[1,512], index: 19, kind: input, shape index: {}]
  %s20 = inlined_call_operand.vmem [shape: bf16[1,512], index: 20, kind: input, shape index: {}]
  %s21 = inlined_call_operand.hbm [shape: bf16[512,128], index: 21, kind: input, shape index: {}]
  %s22 = inlined_call_operand.vmem [shape: f32[1,128], index: 22, kind: input, shape index: {}]
  %s23 = inlined_call_operand.hbm [shape: bf16[48,128], index: 23, kind: output, shape index: {}]
  %s24 = sld [smem:[#allocation0]]
  $region165: #{tpu_custom_call.1} parent=0
    _
  %s26 = ssub.s32 1, %s24
  %s27 = scalar_select 0, %s26, %s24
  $region1: #{tpu_custom_call.1} parent=0
    #allocation2 [shape = 'u8[16384]{0}', space=vmem, size = 0x4000, scoped, tag = 'input window, operand 0']
    #allocation3 [shape = 's32[2]{0}', space=sflag, size = 0x8, scoped, tag = 'scoped memory for tpu_custom_call.1']
    #allocation4 [shape = 's32[2]{0}', space=sflag, size = 0x8, scoped, tag = 'scoped memory for tpu_custom_call.1']
    #allocation5 [shape = 'u8[8192]{0}', space=vmem, size = 0x2000, scoped, tag = 'input window, operand 1']
    #allocation6 [shape = 's32[2]{0}', space=sflag, size = 0x8, scoped, tag = 'scoped memory for tpu_custom_call.1']
    #allocation7 [shape = 'u8[8192]{0}', space=vmem, size = 0x2000, scoped, tag = 'input window, operand 2']
    #allocation8 [shape = 'u8[16384]{0}', space=vmem, size = 0x4000, scoped, tag = 'input window, operand 3']
    #allocation9 [shape = 's32[2]{0}', space=sflag, size = 0x8, scoped, tag = 'scoped memory for tpu_custom_call.1']
    #allocation10 [shape = 'u8[32768]{0}', space=vmem, size = 0x8000, scoped, tag = 'input window, operand 4']
    #allocation11 [shape = 'u8[65536]{0}', space=vmem, size = 0x10000, scoped, tag = 'input window, operand 5, single buffered']
    #allocation12 [shape = 's32[1]{0}', space=sflag, size = 0x4, scoped, tag = 'scoped memory for tpu_custom_call.1']
    #allocation13 [shape = 'u8[32768]{0}', space=vmem, size = 0x8000, scoped, tag = 'input window, operand 9, single buffered']
    #allocation14 [shape = 'u8[65536]{0}', space=vmem, size = 0x10000, scoped, tag = 'input window, operand 13, single buffered']
    #allocation15 [shape = 's32[1]{0}', space=sflag, size = 0x4, scoped, tag = 'scoped memory for tpu_custom_call.1']
    #allocation16 [shape = 'u8[262144]{0}', space=vmem, size = 0x40000, scoped, tag = 'input window, operand 17, single buffered']
    #allocation17 [shape = 'u8[131072]{0}', space=vmem, size = 0x20000, scoped, tag = 'input window, operand 21, single buffered']
    #allocation18 [shape = 's32[1]{0}', space=sflag, size = 0x4, scoped, tag = 'scoped memory for tpu_custom_call.1']
    #allocation19 [shape = 'u8[8192]{0}', space=vmem, size = 0x2000, scoped, tag = 'output window, operand 0']
    %28 = vsyncpa [#allocation3], 0
    %s29 = scalar_lea.sflag [#allocation3], 1
    %30 = vsyncpa %s29, 0
    %31 = vsyncpa [#allocation6], 0
    %s32 = scalar_lea.sflag [#allocation6], 1
    %33 = vsyncpa %s32, 0
    %34 = vsyncpa [#allocation9], 0
    %s35 = scalar_lea.sflag [#allocation9], 1
    %36 = vsyncpa %s35, 0
    %37 = vsyncpa [#allocation12], 0
    %38 = vsyncpa [#allocation15], 0
    %39 = vsyncpa [#allocation18], 0
    %40 = vsyncpa [#allocation4], 0
    %s41 = scalar_lea.sflag [#allocation4], 1
    %42 = vsyncpa %s41, 0
    loop: start=0, step=1, limit=5
    $region2: #{tpu_custom_call.1} parent=1 // loop_pre_header
      _
    $region3: #{tpu_custom_call.1} parent=1 // loop_header
      %s44 = sphi 0, %s48
      %p45 = scmp.ge.s32.totalorder %s44, 5
      %s54 = sphi 0, %s56
      %s57 = sphi 0, %s54
      %s58 = sphi 0, %s57
      %s74 = sphi 0, %s58
      %s80 = sphi 0, %s82
      %s83 = sphi 0, %s80
      %s84 = sphi 0, %s83
      %s100 = sphi 0, %s84
      %s106 = sphi 0, %s108
      %s109 = sphi 0, %s106
      %s110 = sphi 0, %s109
      %s126 = sphi 0, %s110
      %s132 = sphi 0, %s134
      %s135 = sphi 0, %s132
      %s136 = sphi 0, %s135
      %s152 = sphi 0, %s136
      %s158 = sphi 0, %s160
      %s161 = sphi 0, %s158
      %s162 = sphi 0, %s161
      %s178 = sphi 0, %s162
      %s182 = sphi 0, %s182
      %s184 = sphi 0, %s182
      %s185 = sphi 0, %s184
      %s199 = sphi 0, %s185
      %s203 = sphi 0, %s203
      %s205 = sphi 0, %s203
      %s206 = sphi 0, %s205
      %s220 = sphi 0, %s206
      %s224 = sphi 0, %s224
      %s226 = sphi 0, %s224
      %s227 = sphi 0, %s226
      %s241 = sphi 0, %s227
      %s245 = sphi 0, %s245
      %s247 = sphi 0, %s245
      %s248 = sphi 0, %s247
      %s262 = sphi 0, %s248
      %s266 = sphi 0, %s266
      %s268 = sphi 0, %s266
      %s269 = sphi 0, %s268
      %s283 = sphi 0, %s269
      %s287 = sphi 0, %s287
      %s289 = sphi 0, %s287
      %s290 = sphi 0, %s289
      %s304 = sphi 0, %s290
      %s308 = sphi 0, %s308
      %s310 = sphi 0, %s308
      %s311 = sphi 0, %s310
      %s325 = sphi 0, %s311
      %s329 = sphi 0, %s329
      %s331 = sphi 0, %s329
      %s332 = sphi 0, %s331
      %s346 = sphi 0, %s332
      %s350 = sphi 0, %s350
      %s352 = sphi 0, %s350
      %s353 = sphi 0, %s352
      %s367 = sphi 0, %s353
      %s371 = sphi 0, %s371
      %s373 = sphi 0, %s371
      %s374 = sphi 0, %s373
      %s388 = sphi 0, %s374
      %s392 = sphi 0, %s392
      %s394 = sphi 0, %s392
      %s395 = sphi 0, %s394
      %s409 = sphi 0, %s395
      %s413 = sphi 0, %s413
      %s415 = sphi 0, %s413
      %s416 = sphi 0, %s415
      %s430 = sphi 0, %s416
      %s434 = sphi 0, %s434
      %s436 = sphi 0, %s434
      %s437 = sphi 0, %s436
      %s451 = sphi 0, %s437
      %s455 = sphi 0, %s455
      %s457 = sphi 0, %s455
      %s458 = sphi 0, %s457
      %s472 = sphi 0, %s458
      %s476 = sphi 0, %s476
      %s478 = sphi 0, %s476
      %s479 = sphi 0, %s478
      %s493 = sphi 0, %s479
      %s497 = sphi 0, %s497
      %s499 = sphi 0, %s497
      %s500 = sphi 0, %s499
      %s514 = sphi 0, %s500
      %s518 = sphi 0, %s518
      %s520 = sphi 0, %s518
      %s521 = sphi 0, %s520
      %s535 = sphi 0, %s521
      %s539 = sphi 0, %s539
      %s541 = sphi 0, %s539
      %s542 = sphi 0, %s541
      %s556 = sphi 0, %s542
      %s562 = sphi 0, %s564
      %s565 = sphi 0, %s562
      %s566 = sphi 0, %s565
      %s582 = sphi 0, %s566
    $region4: #{tpu_custom_call.1} parent=1 // loop_header_branch
      %47 = sbr.rel (%p45) target = $region8
    $region5: #{tpu_custom_call.1} parent=1 // loop_body
      %s49 = ssub.s32 %s44, 1
      %s50 = ssub.s32 %s44, 2
      %s51 = sadd.s32 %s44, 1
      %s52 = ssub.s32 %s44, %s51
      %p53 = scmp.eq.s32.totalorder %s52, 0
      %s55 = sadd.s32 %s54, 1
      %s56 = scalar_select %p53, %s54, %s55
      %p59 = pneg %p53
      %p60 = scmp.eq.s32.totalorder %s44, 2
      %p61 = por %p59, %p60
      %p62 = scmp.ne.s32.totalorder %s54, %s57
      %p63 = scmp.eq.s32.totalorder %s44, 0
      %p64 = por %p62, %p63
      %p65 = scmp.ne.s32.totalorder %s54, %s57
      %p66 = scmp.eq.s32.totalorder %s49, 2
      %p67 = por %p65, %p66
      %p68 = scmp.ne.s32.totalorder %s57, %s58
      %p69 = scmp.eq.s32.totalorder %s49, 0
      %p70 = por %p68, %p69
      %p71 = scmp.ne.s32.totalorder %s57, %s58
      %p72 = scmp.eq.s32.totalorder %s50, 2
      %p73 = por %p71, %p72
      %p75 = scmp.ne.s32.totalorder %s58, %s74
      %p76 = scmp.eq.s32.totalorder %s50, 0
      %p77 = por %p75, %p76
      %s78 = ssub.s32 %s44, %s51
      %p79 = scmp.eq.s32.totalorder %s78, 0
      %s81 = sadd.s32 %s80, 1
      %s82 = scalar_select %p79, %s80, %s81
      %p85 = pneg %p79
      %p86 = scmp.eq.s32.totalorder %s44, 2
      %p87 = por %p85, %p86
      %p88 = scmp.ne.s32.totalorder %s80, %s83
      %p89 = scmp.eq.s32.totalorder %s44, 0
      %p90 = por %p88, %p89
      %p91 = scmp.ne.s32.totalorder %s80, %s83
      %p92 = scmp.eq.s32.totalorder %s49, 2
      %p93 = por %p91, %p92
      %p94 = scmp.ne.s32.totalorder %s83, %s84
      %p95 = scmp.eq.s32.totalorder %s49, 0
      %p96 = por %p94, %p95
      %p97 = scmp.ne.s32.totalorder %s83, %s84
      %p98 = scmp.eq.s32.totalorder %s50, 2
      %p99 = por %p97, %p98
      %p101 = scmp.ne.s32.totalorder %s84, %s100
      %p102 = scmp.eq.s32.totalorder %s50, 0
      %p103 = por %p101, %p102
      %s104 = ssub.s32 %s44, %s51
      %p105 = scmp.eq.s32.totalorder %s104, 0
      %s107 = sadd.s32 %s106, 1
      %s108 = scalar_select %p105, %s106, %s107
      %p111 = pneg %p105
      %p112 = scmp.eq.s32.totalorder %s44, 2
      %p113 = por %p111, %p112
      %p114 = scmp.ne.s32.totalorder %s106, %s109
      %p115 = scmp.eq.s32.totalorder %s44, 0
      %p116 = por %p114, %p115
      %p117 = scmp.ne.s32.totalorder %s106, %s109
      %p118 = scmp.eq.s32.totalorder %s49, 2
      %p119 = por %p117, %p118
      %p120 = scmp.ne.s32.totalorder %s109, %s110
      %p121 = scmp.eq.s32.totalorder %s49, 0
      %p122 = por %p120, %p121
      %p123 = scmp.ne.s32.totalorder %s109, %s110
      %p124 = scmp.eq.s32.totalorder %s50, 2
      %p125 = por %p123, %p124
      %p127 = scmp.ne.s32.totalorder %s110, %s126
      %p128 = scmp.eq.s32.totalorder %s50, 0
      %p129 = por %p127, %p128
      %s130 = ssub.s32 %s44, %s51
      %p131 = scmp.eq.s32.totalorder %s130, 0
      %s133 = sadd.s32 %s132, 1
      %s134 = scalar_select %p131, %s132, %s133
      %p137 = pneg %p131
      %p138 = scmp.eq.s32.totalorder %s44, 2
      %p139 = por %p137, %p138
      %p140 = scmp.ne.s32.totalorder %s132, %s135
      %p141 = scmp.eq.s32.totalorder %s44, 0
      %p142 = por %p140, %p141
      %p143 = scmp.ne.s32.totalorder %s132, %s135
      %p144 = scmp.eq.s32.totalorder %s49, 2
      %p145 = por %p143, %p144
      %p146 = scmp.ne.s32.totalorder %s135, %s136
      %p147 = scmp.eq.s32.totalorder %s49, 0
      %p148 = por %p146, %p147
      %p149 = scmp.ne.s32.totalorder %s135, %s136
      %p150 = scmp.eq.s32.totalorder %s50, 2
      %p151 = por %p149, %p150
      %p153 = scmp.ne.s32.totalorder %s136, %s152
      %p154 = scmp.eq.s32.totalorder %s50, 0
      %p155 = por %p153, %p154
      %s156 = ssub.s32 %s44, %s51
      %p157 = scmp.eq.s32.totalorder %s156, 0
      %s159 = sadd.s32 %s158, 1
      %s160 = scalar_select %p157, %s158, %s159
      %p163 = pneg %p157
      %p164 = scmp.eq.s32.totalorder %s44, 2
      %p165 = por %p163, %p164
      %p166 = scmp.ne.s32.totalorder %s158, %s161
      %p167 = scmp.eq.s32.totalorder %s44, 0
      %p168 = por %p166, %p167
      %p169 = scmp.ne.s32.totalorder %s158, %s161
      %p170 = scmp.eq.s32.totalorder %s49, 2
      %p171 = por %p169, %p170
      %p172 = scmp.ne.s32.totalorder %s161, %s162
      %p173 = scmp.eq.s32.totalorder %s49, 0
      %p174 = por %p172, %p173
      %p175 = scmp.ne.s32.totalorder %s161, %s162
      %p176 = scmp.eq.s32.totalorder %s50, 2
      %p177 = por %p175, %p176
      %p179 = scmp.ne.s32.totalorder %s162, %s178
      %p180 = scmp.eq.s32.totalorder %s50, 0
      %p181 = por %p179, %p180
      %s183 = sadd.s32 %s182, 1
      %p186 = scmp.eq.s32.totalorder %s44, 2
      %p187 = scmp.ne.s32.totalorder %s182, %s184
      %p188 = scmp.eq.s32.totalorder %s44, 0
      %p189 = por %p187, %p188
      %p190 = scmp.ne.s32.totalorder %s182, %s184
      %p191 = scmp.eq.s32.totalorder %s49, 2
      %p192 = por %p190, %p191
      %p193 = scmp.ne.s32.totalorder %s184, %s185
      %p194 = scmp.eq.s32.totalorder %s49, 0
      %p195 = por %p193, %p194
      %p196 = scmp.ne.s32.totalorder %s184, %s185
      %p197 = scmp.eq.s32.totalorder %s50, 2
      %p198 = por %p196, %p197
      %p200 = scmp.ne.s32.totalorder %s185, %s199
      %p201 = scmp.eq.s32.totalorder %s50, 0
      %p202 = por %p200, %p201
      %s204 = sadd.s32 %s203, 1
      %p207 = scmp.eq.s32.totalorder %s44, 2
      %p208 = scmp.ne.s32.totalorder %s203, %s205
      %p209 = scmp.eq.s32.totalorder %s44, 0
      %p210 = por %p208, %p209
      %p211 = scmp.ne.s32.totalorder %s203, %s205
      %p212 = scmp.eq.s32.totalorder %s49, 2
      %p213 = por %p211, %p212
      %p214 = scmp.ne.s32.totalorder %s205, %s206
      %p215 = scmp.eq.s32.totalorder %s49, 0
      %p216 = por %p214, %p215
      %p217 = scmp.ne.s32.totalorder %s205, %s206
      %p218 = scmp.eq.s32.totalorder %s50, 2
      %p219 = por %p217, %p218
      %p221 = scmp.ne.s32.totalorder %s206, %s220
      %p222 = scmp.eq.s32.totalorder %s50, 0
      %p223 = por %p221, %p222
      %s225 = sadd.s32 %s224, 1
      %p228 = scmp.eq.s32.totalorder %s44, 2
      %p229 = scmp.ne.s32.totalorder %s224, %s226
      %p230 = scmp.eq.s32.totalorder %s44, 0
      %p231 = por %p229, %p230
      %p232 = scmp.ne.s32.totalorder %s224, %s226
      %p233 = scmp.eq.s32.totalorder %s49, 2
      %p234 = por %p232, %p233
      %p235 = scmp.ne.s32.totalorder %s226, %s227
      %p236 = scmp.eq.s32.totalorder %s49, 0
      %p237 = por %p235, %p236
      %p238 = scmp.ne.s32.totalorder %s226, %s227
      %p239 = scmp.eq.s32.totalorder %s50, 2
      %p240 = por %p238, %p239
      %p242 = scmp.ne.s32.totalorder %s227, %s241
      %p243 = scmp.eq.s32.totalorder %s50, 0
      %p244 = por %p242, %p243
      %s246 = sadd.s32 %s245, 1
      %p249 = scmp.eq.s32.totalorder %s44, 2
      %p250 = scmp.ne.s32.totalorder %s245, %s247
      %p251 = scmp.eq.s32.totalorder %s44, 0
      %p252 = por %p250, %p251
      %p253 = scmp.ne.s32.totalorder %s245, %s247
      %p254 = scmp.eq.s32.totalorder %s49, 2
      %p255 = por %p253, %p254
      %p256 = scmp.ne.s32.totalorder %s247, %s248
      %p257 = scmp.eq.s32.totalorder %s49, 0
      %p258 = por %p256, %p257
      %p259 = scmp.ne.s32.totalorder %s247, %s248
      %p260 = scmp.eq.s32.totalorder %s50, 2
      %p261 = por %p259, %p260
      %p263 = scmp.ne.s32.totalorder %s248, %s262
      %p264 = scmp.eq.s32.totalorder %s50, 0
      %p265 = por %p263, %p264
      %s267 = sadd.s32 %s266, 1
      %p270 = scmp.eq.s32.totalorder %s44, 2
      %p271 = scmp.ne.s32.totalorder %s266, %s268
      %p272 = scmp.eq.s32.totalorder %s44, 0
      %p273 = por %p271, %p272
      %p274 = scmp.ne.s32.totalorder %s266, %s268
      %p275 = scmp.eq.s32.totalorder %s49, 2
      %p276 = por %p274, %p275
      %p277 = scmp.ne.s32.totalorder %s268, %s269
      %p278 = scmp.eq.s32.totalorder %s49, 0
      %p279 = por %p277, %p278
      %p280 = scmp.ne.s32.totalorder %s268, %s269
      %p281 = scmp.eq.s32.totalorder %s50, 2
      %p282 = por %p280, %p281
      %p284 = scmp.ne.s32.totalorder %s269, %s283
      %p285 = scmp.eq.s32.totalorder %s50, 0
      %p286 = por %p284, %p285
      %s288 = sadd.s32 %s287, 1
      %p291 = scmp.eq.s32.totalorder %s44, 2
      %p292 = scmp.ne.s32.totalorder %s287, %s289
      %p293 = scmp.eq.s32.totalorder %s44, 0
      %p294 = por %p292, %p293
      %p295 = scmp.ne.s32.totalorder %s287, %s289
      %p296 = scmp.eq.s32.totalorder %s49, 2
      %p297 = por %p295, %p296
      %p298 = scmp.ne.s32.totalorder %s289, %s290
      %p299 = scmp.eq.s32.totalorder %s49, 0
      %p300 = por %p298, %p299
      %p301 = scmp.ne.s32.totalorder %s289, %s290
      %p302 = scmp.eq.s32.totalorder %s50, 2
      %p303 = por %p301, %p302
      %p305 = scmp.ne.s32.totalorder %s290, %s304
      %p306 = scmp.eq.s32.totalorder %s50, 0
      %p307 = por %p305, %p306
      %s309 = sadd.s32 %s308, 1
      %p312 = scmp.eq.s32.totalorder %s44, 2
      %p313 = scmp.ne.s32.totalorder %s308, %s310
      %p314 = scmp.eq.s32.totalorder %s44, 0
      %p315 = por %p313, %p314
      %p316 = scmp.ne.s32.totalorder %s308, %s310
      %p317 = scmp.eq.s32.totalorder %s49, 2
      %p318 = por %p316, %p317
      %p319 = scmp.ne.s32.totalorder %s310, %s311
      %p320 = scmp.eq.s32.totalorder %s49, 0
      %p321 = por %p319, %p320
      %p322 = scmp.ne.s32.totalorder %s310, %s311
      %p323 = scmp.eq.s32.totalorder %s50, 2
      %p324 = por %p322, %p323
      %p326 = scmp.ne.s32.totalorder %s311, %s325
      %p327 = scmp.eq.s32.totalorder %s50, 0
      %p328 = por %p326, %p327
      %s330 = sadd.s32 %s329, 1
      %p333 = scmp.eq.s32.totalorder %s44, 2
      %p334 = scmp.ne.s32.totalorder %s329, %s331
      %p335 = scmp.eq.s32.totalorder %s44, 0
      %p336 = por %p334, %p335
      %p337 = scmp.ne.s32.totalorder %s329, %s331
      %p338 = scmp.eq.s32.totalorder %s49, 2
      %p339 = por %p337, %p338
      %p340 = scmp.ne.s32.totalorder %s331, %s332
      %p341 = scmp.eq.s32.totalorder %s49, 0
      %p342 = por %p340, %p341
      %p343 = scmp.ne.s32.totalorder %s331, %s332
      %p344 = scmp.eq.s32.totalorder %s50, 2
      %p345 = por %p343, %p344
      %p347 = scmp.ne.s32.totalorder %s332, %s346
      %p348 = scmp.eq.s32.totalorder %s50, 0
      %p349 = por %p347, %p348
      %s351 = sadd.s32 %s350, 1
      %p354 = scmp.eq.s32.totalorder %s44, 2
      %p355 = scmp.ne.s32.totalorder %s350, %s352
      %p356 = scmp.eq.s32.totalorder %s44, 0
      %p357 = por %p355, %p356
      %p358 = scmp.ne.s32.totalorder %s350, %s352
      %p359 = scmp.eq.s32.totalorder %s49, 2
      %p360 = por %p358, %p359
      %p361 = scmp.ne.s32.totalorder %s352, %s353
      %p362 = scmp.eq.s32.totalorder %s49, 0
      %p363 = por %p361, %p362
      %p364 = scmp.ne.s32.totalorder %s352, %s353
      %p365 = scmp.eq.s32.totalorder %s50, 2
      %p366 = por %p364, %p365
      %p368 = scmp.ne.s32.totalorder %s353, %s367
      %p369 = scmp.eq.s32.totalorder %s50, 0
      %p370 = por %p368, %p369
      %s372 = sadd.s32 %s371, 1
      %p375 = scmp.eq.s32.totalorder %s44, 2
      %p376 = scmp.ne.s32.totalorder %s371, %s373
      %p377 = scmp.eq.s32.totalorder %s44, 0
      %p378 = por %p376, %p377
      %p379 = scmp.ne.s32.totalorder %s371, %s373
      %p380 = scmp.eq.s32.totalorder %s49, 2
      %p381 = por %p379, %p380
      %p382 = scmp.ne.s32.totalorder %s373, %s374
      %p383 = scmp.eq.s32.totalorder %s49, 0
      %p384 = por %p382, %p383
      %p385 = scmp.ne.s32.totalorder %s373, %s374
      %p386 = scmp.eq.s32.totalorder %s50, 2
      %p387 = por %p385, %p386
      %p389 = scmp.ne.s32.totalorder %s374, %s388
      %p390 = scmp.eq.s32.totalorder %s50, 0
      %p391 = por %p389, %p390
      %s393 = sadd.s32 %s392, 1
      %p396 = scmp.eq.s32.totalorder %s44, 2
      %p397 = scmp.ne.s32.totalorder %s392, %s394
      %p398 = scmp.eq.s32.totalorder %s44, 0
      %p399 = por %p397, %p398
      %p400 = scmp.ne.s32.totalorder %s392, %s394
      %p401 = scmp.eq.s32.totalorder %s49, 2
      %p402 = por %p400, %p401
      %p403 = scmp.ne.s32.totalorder %s394, %s395
      %p404 = scmp.eq.s32.totalorder %s49, 0
      %p405 = por %p403, %p404
      %p406 = scmp.ne.s32.totalorder %s394, %s395
      %p407 = scmp.eq.s32.totalorder %s50, 2
      %p408 = por %p406, %p407
      %p410 = scmp.ne.s32.totalorder %s395, %s409
      %p411 = scmp.eq.s32.totalorder %s50, 0
      %p412 = por %p410, %p411
      %s414 = sadd.s32 %s413, 1
      %p417 = scmp.eq.s32.totalorder %s44, 2
      %p418 = scmp.ne.s32.totalorder %s413, %s415
      %p419 = scmp.eq.s32.totalorder %s44, 0
      %p420 = por %p418, %p419
      %p421 = scmp.ne.s32.totalorder %s413, %s415
      %p422 = scmp.eq.s32.totalorder %s49, 2
      %p423 = por %p421, %p422
      %p424 = scmp.ne.s32.totalorder %s415, %s416
      %p425 = scmp.eq.s32.totalorder %s49, 0
      %p426 = por %p424, %p425
      %p427 = scmp.ne.s32.totalorder %s415, %s416
      %p428 = scmp.eq.s32.totalorder %s50, 2
      %p429 = por %p427, %p428
      %p431 = scmp.ne.s32.totalorder %s416, %s430
      %p432 = scmp.eq.s32.totalorder %s50, 0
      %p433 = por %p431, %p432
      %s435 = sadd.s32 %s434, 1
      %p438 = scmp.eq.s32.totalorder %s44, 2
      %p439 = scmp.ne.s32.totalorder %s434, %s436
      %p440 = scmp.eq.s32.totalorder %s44, 0
      %p441 = por %p439, %p440
      %p442 = scmp.ne.s32.totalorder %s434, %s436
      %p443 = scmp.eq.s32.totalorder %s49, 2
      %p444 = por %p442, %p443
      %p445 = scmp.ne.s32.totalorder %s436, %s437
      %p446 = scmp.eq.s32.totalorder %s49, 0
      %p447 = por %p445, %p446
      %p448 = scmp.ne.s32.totalorder %s436, %s437
      %p449 = scmp.eq.s32.totalorder %s50, 2
      %p450 = por %p448, %p449
      %p452 = scmp.ne.s32.totalorder %s437, %s451
      %p453 = scmp.eq.s32.totalorder %s50, 0
      %p454 = por %p452, %p453
      %s456 = sadd.s32 %s455, 1
      %p459 = scmp.eq.s32.totalorder %s44, 2
      %p460 = scmp.ne.s32.totalorder %s455, %s457
      %p461 = scmp.eq.s32.totalorder %s44, 0
      %p462 = por %p460, %p461
      %p463 = scmp.ne.s32.totalorder %s455, %s457
      %p464 = scmp.eq.s32.totalorder %s49, 2
      %p465 = por %p463, %p464
      %p466 = scmp.ne.s32.totalorder %s457, %s458
      %p467 = scmp.eq.s32.totalorder %s49, 0
      %p468 = por %p466, %p467
      %p469 = scmp.ne.s32.totalorder %s457, %s458
      %p470 = scmp.eq.s32.totalorder %s50, 2
      %p471 = por %p469, %p470
      %p473 = scmp.ne.s32.totalorder %s458, %s472
      %p474 = scmp.eq.s32.totalorder %s50, 0
      %p475 = por %p473, %p474
      %s477 = sadd.s32 %s476, 1
      %p480 = scmp.eq.s32.totalorder %s44, 2
      %p481 = scmp.ne.s32.totalorder %s476, %s478
      %p482 = scmp.eq.s32.totalorder %s44, 0
      %p483 = por %p481, %p482
      %p484 = scmp.ne.s32.totalorder %s476, %s478
      %p485 = scmp.eq.s32.totalorder %s49, 2
      %p486 = por %p484, %p485
      %p487 = scmp.ne.s32.totalorder %s478, %s479
      %p488 = scmp.eq.s32.totalorder %s49, 0
      %p489 = por %p487, %p488
      %p490 = scmp.ne.s32.totalorder %s478, %s479
      %p491 = scmp.eq.s32.totalorder %s50, 2
      %p492 = por %p490, %p491
      %p494 = scmp.ne.s32.totalorder %s479, %s493
      %p495 = scmp.eq.s32.totalorder %s50, 0
      %p496 = por %p494, %p495
      %s498 = sadd.s32 %s497, 1
      %p501 = scmp.eq.s32.totalorder %s44, 2
      %p502 = scmp.ne.s32.totalorder %s497, %s499
      %p503 = scmp.eq.s32.totalorder %s44, 0
      %p504 = por %p502, %p503
      %p505 = scmp.ne.s32.totalorder %s497, %s499
      %p506 = scmp.eq.s32.totalorder %s49, 2
      %p507 = por %p505, %p506
      %p508 = scmp.ne.s32.totalorder %s499, %s500
      %p509 = scmp.eq.s32.totalorder %s49, 0
      %p510 = por %p508, %p509
      %p511 = scmp.ne.s32.totalorder %s499, %s500
      %p512 = scmp.eq.s32.totalorder %s50, 2
      %p513 = por %p511, %p512
      %p515 = scmp.ne.s32.totalorder %s500, %s514
      %p516 = scmp.eq.s32.totalorder %s50, 0
      %p517 = por %p515, %p516
      %s519 = sadd.s32 %s518, 1
      %p522 = scmp.eq.s32.totalorder %s44, 2
      %p523 = scmp.ne.s32.totalorder %s518, %s520
      %p524 = scmp.eq.s32.totalorder %s44, 0
      %p525 = por %p523, %p524
      %p526 = scmp.ne.s32.totalorder %s518, %s520
      %p527 = scmp.eq.s32.totalorder %s49, 2
      %p528 = por %p526, %p527
      %p529 = scmp.ne.s32.totalorder %s520, %s521
      %p530 = scmp.eq.s32.totalorder %s49, 0
      %p531 = por %p529, %p530
      %p532 = scmp.ne.s32.totalorder %s520, %s521
      %p533 = scmp.eq.s32.totalorder %s50, 2
      %p534 = por %p532, %p533
      %p536 = scmp.ne.s32.totalorder %s521, %s535
      %p537 = scmp.eq.s32.totalorder %s50, 0
      %p538 = por %p536, %p537
      %s540 = sadd.s32 %s539, 1
      %p543 = scmp.eq.s32.totalorder %s44, 2
      %p544 = scmp.ne.s32.totalorder %s539, %s541
      %p545 = scmp.eq.s32.totalorder %s44, 0
      %p546 = por %p544, %p545
      %p547 = scmp.ne.s32.totalorder %s539, %s541
      %p548 = scmp.eq.s32.totalorder %s49, 2
      %p549 = por %p547, %p548
      %p550 = scmp.ne.s32.totalorder %s541, %s542
      %p551 = scmp.eq.s32.totalorder %s49, 0
      %p552 = por %p550, %p551
      %p553 = scmp.ne.s32.totalorder %s541, %s542
      %p554 = scmp.eq.s32.totalorder %s50, 2
      %p555 = por %p553, %p554
      %p557 = scmp.ne.s32.totalorder %s542, %s556
      %p558 = scmp.eq.s32.totalorder %s50, 0
      %p559 = por %p557, %p558
      %s560 = ssub.s32 %s44, %s51
      %p561 = scmp.eq.s32.totalorder %s560, 0
      %s563 = sadd.s32 %s562, 1
      %s564 = scalar_select %p561, %s562, %s563
      %p567 = pneg %p561
      %p568 = scmp.eq.s32.totalorder %s44, 2
      %p569 = por %p567, %p568
      %p570 = scmp.ne.s32.totalorder %s562, %s565
      %p571 = scmp.eq.s32.totalorder %s44, 0
      %p572 = por %p570, %p571
      %p573 = scmp.ne.s32.totalorder %s562, %s565
      %p574 = scmp.eq.s32.totalorder %s49, 2
      %p575 = por %p573, %p574
      %p576 = scmp.ne.s32.totalorder %s565, %s566
      %p577 = scmp.eq.s32.totalorder %s49, 0
      %p578 = por %p576, %p577
      %p579 = scmp.ne.s32.totalorder %s565, %s566
      %p580 = scmp.eq.s32.totalorder %s50, 2
      %p581 = por %p579, %p580
      %p583 = scmp.ne.s32.totalorder %s566, %s582
      %p584 = scmp.eq.s32.totalorder %s50, 0
      %p585 = por %p583, %p584
      %p586 = scmp.le.s32.totalorder 1, %s44
      %p587 = scmp.lt.s32.totalorder %s44, 4
      %p588 = pnand %p586, %p587
      %p589 = pneg %p588
      // Predicated region
      $region9: #{tpu_custom_call.1} parent=5 // pred_check
        _
      $region10: #{tpu_custom_call.1} parent=5 // pred_check_branch
        %591 = sbr.rel (%p588) target = $region12
      $region11: #{tpu_custom_call.1} parent=5 // pred_region
        %s592 = ssub.s32 %s44, 1
        // Predicated region
        $region13: #{tpu_custom_call.1} parent=11 // pred_check
          %p593 = pneg %p195
        $region14: #{tpu_custom_call.1} parent=11 // pred_check_branch
          %595 = sbr.rel (%p593) target = $region16
        $region15: #{tpu_custom_call.1} parent=11 // pred_region
          %s597 = ssub.s32 2048, 2048
          %598 = vsyncadd [#allocation12], %s597
          %s599 = sshll.u32 [#allocation11], 4
          %s600 = int_to_ptr.vmem [resolvable:$true] %s599
          %605 = dma.hbm_to_vmem [thread:$0]  %s5, 2048, %s600, [#allocation12], 64, 64, 4
        $region16: #{tpu_custom_call.1} parent=11 // pred_fallthru
          _
        // Predicated region
        $region17: #{tpu_custom_call.1} parent=11 // pred_check
          %p606 = pneg %p216
        $region18: #{tpu_custom_call.1} parent=11 // pred_check_branch
          %608 = sbr.rel (%p606) target = $region20
        $region19: #{tpu_custom_call.1} parent=11 // pred_region
          _
        $region20: #{tpu_custom_call.1} parent=11 // pred_fallthru
          _
        // Predicated region
        $region21: #{tpu_custom_call.1} parent=11 // pred_check
          %p609 = pneg %p237
        $region22: #{tpu_custom_call.1} parent=11 // pred_check_branch
          %611 = sbr.rel (%p609) target = $region24
        $region23: #{tpu_custom_call.1} parent=11 // pred_region
          _
        $region24: #{tpu_custom_call.1} parent=11 // pred_fallthru
          _
        // Predicated region
        $region25: #{tpu_custom_call.1} parent=11 // pred_check
          %p612 = pneg %p258
        $region26: #{tpu_custom_call.1} parent=11 // pred_check_branch
          %614 = sbr.rel (%p612) target = $region28
        $region27: #{tpu_custom_call.1} parent=11 // pred_region
          _
        $region28: #{tpu_custom_call.1} parent=11 // pred_fallthru
          _
        // Predicated region
        $region29: #{tpu_custom_call.1} parent=11 // pred_check
          %p615 = pneg %p279
        $region30: #{tpu_custom_call.1} parent=11 // pred_check_branch
          %617 = sbr.rel (%p615) target = $region32
        $region31: #{tpu_custom_call.1} parent=11 // pred_region
          %s619 = ssub.s32 1024, 1024
          %620 = vsyncadd [#allocation12], %s619
          %s621 = sshll.u32 [#allocation13], 4
          %s622 = int_to_ptr.vmem [resolvable:$true] %s621
          %627 = dma.hbm_to_vmem [thread:$0]  %s9, 1024, %s622, [#allocation12], 64, 64, 4
        $region32: #{tpu_custom_call.1} parent=11 // pred_fallthru
          _
        // Predicated region
        $region33: #{tpu_custom_call.1} parent=11 // pred_check
          %p628 = pneg %p300
        $region34: #{tpu_custom_call.1} parent=11 // pred_check_branch
          %630 = sbr.rel (%p628) target = $region36
        $region35: #{tpu_custom_call.1} parent=11 // pred_region
          _
        $region36: #{tpu_custom_call.1} parent=11 // pred_fallthru
          _
        // Predicated region
        $region37: #{tpu_custom_call.1} parent=11 // pred_check
          %p631 = pneg %p321
        $region38: #{tpu_custom_call.1} parent=11 // pred_check_branch
          %633 = sbr.rel (%p631) target = $region40
        $region39: #{tpu_custom_call.1} parent=11 // pred_region
          _
        $region40: #{tpu_custom_call.1} parent=11 // pred_fallthru
          _
        // Predicated region
        $region41: #{tpu_custom_call.1} parent=11 // pred_check
          %p634 = pneg %p342
        $region42: #{tpu_custom_call.1} parent=11 // pred_check_branch
          %636 = sbr.rel (%p634) target = $region44
        $region43: #{tpu_custom_call.1} parent=11 // pred_region
          _
        $region44: #{tpu_custom_call.1} parent=11 // pred_fallthru
          _
        // Predicated region
        $region45: #{tpu_custom_call.1} parent=11 // pred_check
          %p637 = pneg %p363
        $region46: #{tpu_custom_call.1} parent=11 // pred_check_branch
          %639 = sbr.rel (%p637) target = $region48
        $region47: #{tpu_custom_call.1} parent=11 // pred_region
          %s641 = ssub.s32 2048, 2048
          %642 = vsyncadd [#allocation15], %s641
          %s643 = sshll.u32 [#allocation14], 4
          %s644 = int_to_ptr.vmem [resolvable:$true] %s643
          %649 = dma.hbm_to_vmem [thread:$0]  %s13, 2048, %s644, [#allocation15], 128, 128, 8
        $region48: #{tpu_custom_call.1} parent=11 // pred_fallthru
          _
        // Predicated region
        $region49: #{tpu_custom_call.1} parent=11 // pred_check
          %p650 = pneg %p384
        $region50: #{tpu_custom_call.1} parent=11 // pred_check_branch
          %652 = sbr.rel (%p650) target = $region52
        $region51: #{tpu_custom_call.1} parent=11 // pred_region
          _
        $region52: #{tpu_custom_call.1} parent=11 // pred_fallthru
          _
        // Predicated region
        $region53: #{tpu_custom_call.1} parent=11 // pred_check
          %p653 = pneg %p405
        $region54: #{tpu_custom_call.1} parent=11 // pred_check_branch
          %655 = sbr.rel (%p653) target = $region56
        $region55: #{tpu_custom_call.1} parent=11 // pred_region
          _
        $region56: #{tpu_custom_call.1} parent=11 // pred_fallthru
          _
        // Predicated region
        $region57: #{tpu_custom_call.1} parent=11 // pred_check
          %p656 = pneg %p426
        $region58: #{tpu_custom_call.1} parent=11 // pred_check_branch
          %658 = sbr.rel (%p656) target = $region60
        $region59: #{tpu_custom_call.1} parent=11 // pred_region
          _
        $region60: #{tpu_custom_call.1} parent=11 // pred_fallthru
          _
        // Predicated region
        $region61: #{tpu_custom_call.1} parent=11 // pred_check
          %p659 = pneg %p447
        $region62: #{tpu_custom_call.1} parent=11 // pred_check_branch
          %661 = sbr.rel (%p659) target = $region64
        $region63: #{tpu_custom_call.1} parent=11 // pred_region
          %s663 = ssub.s32 8192, 8192
          %664 = vsyncadd [#allocation15], %s663
          %s665 = sshll.u32 [#allocation16], 4
          %s666 = int_to_ptr.vmem [resolvable:$true] %s665
          %671 = dma.hbm_to_vmem [thread:$0]  %s17, 8192, %s666, [#allocation15], 256, 256, 16
        $region64: #{tpu_custom_call.1} parent=11 // pred_fallthru
          _
        // Predicated region
        $region65: #{tpu_custom_call.1} parent=11 // pred_check
          %p672 = pneg %p468
        $region66: #{tpu_custom_call.1} parent=11 // pred_check_branch
          %674 = sbr.rel (%p672) target = $region68
        $region67: #{tpu_custom_call.1} parent=11 // pred_region
          _
        $region68: #{tpu_custom_call.1} parent=11 // pred_fallthru
          _
        // Predicated region
        $region69: #{tpu_custom_call.1} parent=11 // pred_check
          %p675 = pneg %p489
        $region70: #{tpu_custom_call.1} parent=11 // pred_check_branch
          %677 = sbr.rel (%p675) target = $region72
        $region71: #{tpu_custom_call.1} parent=11 // pred_region
          _
        $region72: #{tpu_custom_call.1} parent=11 // pred_fallthru
          _
        // Predicated region
        $region73: #{tpu_custom_call.1} parent=11 // pred_check
          %p678 = pneg %p510
        $region74: #{tpu_custom_call.1} parent=11 // pred_check_branch
          %680 = sbr.rel (%p678) target = $region76
        $region75: #{tpu_custom_call.1} parent=11 // pred_region
          _
        $region76: #{tpu_custom_call.1} parent=11 // pred_fallthru
          _
        // Predicated region
        $region77: #{tpu_custom_call.1} parent=11 // pred_check
          %p681 = pneg %p531
        $region78: #{tpu_custom_call.1} parent=11 // pred_check_branch
          %683 = sbr.rel (%p681) target = $region80
        $region79: #{tpu_custom_call.1} parent=11 // pred_region
          %s685 = ssub.s32 4096, 4096
          %686 = vsyncadd [#allocation18], %s685
          %s687 = sshll.u32 [#allocation17], 4
          %s688 = int_to_ptr.vmem [resolvable:$true] %s687
          %693 = dma.hbm_to_vmem [thread:$0]  %s21, 4096, %s688, [#allocation18], 64, 64, 4
        $region80: #{tpu_custom_call.1} parent=11 // pred_fallthru
          _
        // Predicated region
        $region81: #{tpu_custom_call.1} parent=11 // pred_check
          %p694 = pneg %p552
        $region82: #{tpu_custom_call.1} parent=11 // pred_check_branch
          %696 = sbr.rel (%p694) target = $region84
        $region83: #{tpu_custom_call.1} parent=11 // pred_region
          _
        $region84: #{tpu_custom_call.1} parent=11 // pred_fallthru
          _
      $region12: #{tpu_custom_call.1} parent=5 // pred_fallthru
        _
      %p697 = scmp.lt.s32.totalorder %s44, 3
      // Predicated region
      $region85: #{tpu_custom_call.1} parent=5 // pred_check
        %p698 = pneg %p697
      $region86: #{tpu_custom_call.1} parent=5 // pred_check_branch
        %700 = sbr.rel (%p698) target = $region88
      $region87: #{tpu_custom_call.1} parent=5 // pred_region
        // Predicated region
        $region89: #{tpu_custom_call.1} parent=87 // pred_check
          %p701 = pneg %p64
        $region90: #{tpu_custom_call.1} parent=87 // pred_check_branch
          %703 = sbr.rel (%p701) target = $region92
        $region91: #{tpu_custom_call.1} parent=87 // pred_region
          %s704 = sand.u32 %s54, 1
          %s705 = scalar_lea.sflag [#allocation3], %s704
          %s706 = sand.u32 %s54, 1
          %s707 = smul.addr %s706, 16
          %s708 = scalar_lea.vmem [#allocation2], %s707
          %s709 = smul.u32 2, %s44
          %s711 = ssub.s32 256, 256
          %712 = vsyncadd %s705, %s711
          %s713 = smul.addr %s709, 2
          %s714 = smul.addr %s713, 64
          %s715 = scalar_lea.hbm %s0, %s714
          %s716 = sshll.u32 %s708, 4
          %s717 = int_to_ptr.vmem [resolvable:$true] %s716
          %722 = dma.hbm_to_vmem [thread:$0]  %s715, 256, %s717, %s705, 128, 128, 8
        $region92: #{tpu_custom_call.1} parent=87 // pred_fallthru
          _
        // Predicated region
        $region93: #{tpu_custom_call.1} parent=87 // pred_check
          %p723 = pneg %p90
        $region94: #{tpu_custom_call.1} parent=87 // pred_check_branch
          %725 = sbr.rel (%p723) target = $region96
        $region95: #{tpu_custom_call.1} parent=87 // pred_region
          %s726 = sand.u32 %s44, 1
          %s727 = scalar_lea.sflag [#allocation6], %s726
          %s728 = sand.u32 %s80, 1
          %s729 = smul.addr %s728, 8
          %s730 = scalar_lea.vmem [#allocation5], %s729
          %s731 = smul.u32 2, %s44
          %s733 = ssub.s32 128, 128
          %734 = vsyncadd %s727, %s733
          %s735 = smul.addr %s731, 64
          %s736 = scalar_lea.hbm %s1, %s735
          %s737 = sshll.u32 %s730, 4
          %s738 = int_to_ptr.vmem [resolvable:$true] %s737
          %743 = dma.hbm_to_vmem [thread:$0]  %s736, 128, %s738, %s727, 64, 64, 4
        $region96: #{tpu_custom_call.1} parent=87 // pred_fallthru
          _
        // Predicated region
        $region97: #{tpu_custom_call.1} parent=87 // pred_check
          %p744 = pneg %p116
        $region98: #{tpu_custom_call.1} parent=87 // pred_check_branch
          %746 = sbr.rel (%p744) target = $region100
        $region99: #{tpu_custom_call.1} parent=87 // pred_region
          %s747 = sand.u32 %s44, 1
          %s748 = scalar_lea.sflag [#allocation6], %s747
          %s749 = sand.u32 %s106, 1
          %s750 = smul.addr %s749, 8
          %s751 = scalar_lea.vmem [#allocation7], %s750
          %s752 = smul.u32 2, %s44
          %s754 = ssub.s32 128, 128
          %755 = vsyncadd %s748, %s754
          %s756 = smul.addr %s752, 64
          %s757 = scalar_lea.hbm %s2, %s756
          %s758 = sshll.u32 %s751, 4
          %s759 = int_to_ptr.vmem [resolvable:$true] %s758
          %764 = dma.hbm_to_vmem [thread:$0]  %s757, 128, %s759, %s748, 64, 64, 4
        $region100: #{tpu_custom_call.1} parent=87 // pred_fallthru
          _
        // Predicated region
        $region101: #{tpu_custom_call.1} parent=87 // pred_check
          %p765 = pneg %p142
        $region102: #{tpu_custom_call.1} parent=87 // pred_check_branch
          %767 = sbr.rel (%p765) target = $region104
        $region103: #{tpu_custom_call.1} parent=87 // pred_region
          %s768 = sand.u32 %s44, 1
          %s769 = scalar_lea.sflag [#allocation9], %s768
          %s770 = sand.u32 %s132, 1
          %s771 = smul.addr %s770, 16
          %s772 = scalar_lea.vmem [#allocation8], %s771
          %s773 = smul.u32 2, %s44
          %s775 = ssub.s32 256, 256
          %776 = vsyncadd %s769, %s775
          %s777 = smul.addr %s773, 2
          %s778 = smul.addr %s777, 64
          %s779 = scalar_lea.hbm %s3, %s778
          %s780 = sshll.u32 %s772, 4
          %s781 = int_to_ptr.vmem [resolvable:$true] %s780
          %786 = dma.hbm_to_vmem [thread:$0]  %s779, 256, %s781, %s769, 128, 128, 8
        $region104: #{tpu_custom_call.1} parent=87 // pred_fallthru
          _
        // Predicated region
        $region105: #{tpu_custom_call.1} parent=87 // pred_check
          %p787 = pneg %p168
        $region106: #{tpu_custom_call.1} parent=87 // pred_check_branch
          %789 = sbr.rel (%p787) target = $region108
        $region107: #{tpu_custom_call.1} parent=87 // pred_region
          %s790 = sand.u32 %s44, 1
          %s791 = scalar_lea.sflag [#allocation9], %s790
          %s792 = sand.u32 %s158, 1
          %s793 = smul.addr %s792, 32
          %s794 = scalar_lea.vmem [#allocation10], %s793
          %s795 = smul.u32 2, %s44
          %s797 = ssub.s32 512, 512
          %798 = vsyncadd %s791, %s797
          %s799 = smul.addr %s795, 4
          %s800 = smul.addr %s799, 64
          %s801 = scalar_lea.hbm %s4, %s800
          %s802 = sshll.u32 %s794, 4
          %s803 = int_to_ptr.vmem [resolvable:$true] %s802
          %808 = dma.hbm_to_vmem [thread:$0]  %s801, 512, %s803, %s791, 256, 256, 16
        $region108: #{tpu_custom_call.1} parent=87 // pred_fallthru
          _
      $region88: #{tpu_custom_call.1} parent=5 // pred_fallthru
        _
      %p809 = scmp.le.s32.totalorder 1, %s44
      %p810 = scmp.lt.s32.totalorder %s44, 4
      %p811 = pnand %p809, %p810
      %p812 = pneg %p811
      // Predicated region
      $region109: #{tpu_custom_call.1} parent=5 // pred_check
        _
      $region110: #{tpu_custom_call.1} parent=5 // pred_check_branch
        %814 = sbr.rel (%p811) target = $region112
      $region111: #{tpu_custom_call.1} parent=5 // pred_region
        %s815 = ssub.s32 %s44, 1
        %s816 = sand.u32 %s57, 1
        %s817 = scalar_lea.sflag [#allocation3], %s816
        %s818 = sand.u32 %s57, 1
        %s819 = smul.addr %s818, 16
        %s820 = scalar_lea.vmem [#allocation2], %s819
        // Predicated region
        $region113: #{tpu_custom_call.1} parent=111 // pred_check
          %p821 = pneg %p70
        $region114: #{tpu_custom_call.1} parent=111 // pred_check_branch
          %823 = sbr.rel (%p821) target = $region116
        $region115: #{tpu_custom_call.1} parent=111 // pred_region
          %824 = dma.done %s817, 256
        $region116: #{tpu_custom_call.1} parent=111 // pred_fallthru
          _
        %s825 = sand.u32 %s49, 1
        %s826 = scalar_lea.sflag [#allocation6], %s825
        %s827 = sand.u32 %s83, 1
        %s828 = smul.addr %s827, 8
        %s829 = scalar_lea.vmem [#allocation5], %s828
        // Predicated region
        $region117: #{tpu_custom_call.1} parent=111 // pred_check
          %p830 = pneg %p96
        $region118: #{tpu_custom_call.1} parent=111 // pred_check_branch
          %832 = sbr.rel (%p830) target = $region120
        $region119: #{tpu_custom_call.1} parent=111 // pred_region
          %833 = dma.done %s826, 128
        $region120: #{tpu_custom_call.1} parent=111 // pred_fallthru
          _
        %s834 = sand.u32 %s49, 1
        %s835 = scalar_lea.sflag [#allocation6], %s834
        %s836 = sand.u32 %s109, 1
        %s837 = smul.addr %s836, 8
        %s838 = scalar_lea.vmem [#allocation7], %s837
        // Predicated region
        $region121: #{tpu_custom_call.1} parent=111 // pred_check
          %p839 = pneg %p122
        $region122: #{tpu_custom_call.1} parent=111 // pred_check_branch
          %841 = sbr.rel (%p839) target = $region124
        $region123: #{tpu_custom_call.1} parent=111 // pred_region
          %842 = dma.done %s835, 128
        $region124: #{tpu_custom_call.1} parent=111 // pred_fallthru
          _
        %s843 = sand.u32 %s49, 1
        %s844 = scalar_lea.sflag [#allocation9], %s843
        %s845 = sand.u32 %s135, 1
        %s846 = smul.addr %s845, 16
        %s847 = scalar_lea.vmem [#allocation8], %s846
        // Predicated region
        $region125: #{tpu_custom_call.1} parent=111 // pred_check
          %p848 = pneg %p148
        $region126: #{tpu_custom_call.1} parent=111 // pred_check_branch
          %850 = sbr.rel (%p848) target = $region128
        $region127: #{tpu_custom_call.1} parent=111 // pred_region
          %851 = dma.done %s844, 256
        $region128: #{tpu_custom_call.1} parent=111 // pred_fallthru
          _
        %s852 = sand.u32 %s49, 1
        %s853 = scalar_lea.sflag [#allocation9], %s852
        %s854 = sand.u32 %s161, 1
        %s855 = smul.addr %s854, 32
        %s856 = scalar_lea.vmem [#allocation10], %s855
        // Predicated region
        $region129: #{tpu_custom_call.1} parent=111 // pred_check
          %p857 = pneg %p174
        $region130: #{tpu_custom_call.1} parent=111 // pred_check_branch
          %859 = sbr.rel (%p857) target = $region132
        $region131: #{tpu_custom_call.1} parent=111 // pred_region
          %860 = dma.done %s853, 512
        $region132: #{tpu_custom_call.1} parent=111 // pred_fallthru
          _
        // Predicated region
        $region133: #{tpu_custom_call.1} parent=111 // pred_check
          %p861 = pneg %p195
        $region134: #{tpu_custom_call.1} parent=111 // pred_check_branch
          %863 = sbr.rel (%p861) target = $region136
        $region135: #{tpu_custom_call.1} parent=111 // pred_region
          %864 = dma.done [#allocation12], 2048
        $region136: #{tpu_custom_call.1} parent=111 // pred_fallthru
          _
        // Predicated region
        $region137: #{tpu_custom_call.1} parent=111 // pred_check
          %p865 = pneg %p279
        $region138: #{tpu_custom_call.1} parent=111 // pred_check_branch
          %867 = sbr.rel (%p865) target = $region140
        $region139: #{tpu_custom_call.1} parent=111 // pred_region
          %868 = dma.done [#allocation12], 1024
        $region140: #{tpu_custom_call.1} parent=111 // pred_fallthru
          _
        // Predicated region
        $region141: #{tpu_custom_call.1} parent=111 // pred_check
          %p869 = pneg %p363
        $region142: #{tpu_custom_call.1} parent=111 // pred_check_branch
          %871 = sbr.rel (%p869) target = $region144
        $region143: #{tpu_custom_call.1} parent=111 // pred_region
          %872 = dma.done [#allocation15], 2048
        $region144: #{tpu_custom_call.1} parent=111 // pred_fallthru
          _
        // Predicated region
        $region145: #{tpu_custom_call.1} parent=111 // pred_check
          %p873 = pneg %p447
        $region146: #{tpu_custom_call.1} parent=111 // pred_check_branch
          %875 = sbr.rel (%p873) target = $region148
        $region147: #{tpu_custom_call.1} parent=111 // pred_region
          %876 = dma.done [#allocation15], 8192
        $region148: #{tpu_custom_call.1} parent=111 // pred_fallthru
          _
        // Predicated region
        $region149: #{tpu_custom_call.1} parent=111 // pred_check
          %p877 = pneg %p531
        $region150: #{tpu_custom_call.1} parent=111 // pred_check_branch
          %879 = sbr.rel (%p877) target = $region152
        $region151: #{tpu_custom_call.1} parent=111 // pred_region
          %880 = dma.done [#allocation18], 4096
        $region152: #{tpu_custom_call.1} parent=111 // pred_fallthru
          _
        %s881 = sand.u32 %s57, 1
        %s882 = scalar_lea.sflag [#allocation3], %s881
        %s883 = sand.u32 %s57, 1
        %s884 = smul.addr %s883, 16
        %s885 = scalar_lea.vmem [#allocation2], %s884
        %p886 = pneg %p70
        %p887 = pneg %p67
        %s888 = sand.u32 %s49, 1
        %s889 = scalar_lea.sflag [#allocation6], %s888
        %s890 = sand.u32 %s83, 1
        %s891 = smul.addr %s890, 8
        %s892 = scalar_lea.vmem [#allocation5], %s891
        %p893 = pneg %p96
        %p894 = pneg %p93
        %s895 = sand.u32 %s49, 1
        %s896 = scalar_lea.sflag [#allocation6], %s895
        %s897 = sand.u32 %s109, 1
        %s898 = smul.addr %s897, 8
        %s899 = scalar_lea.vmem [#allocation7], %s898
        %p900 = pneg %p122
        %p901 = pneg %p119
        %s902 = sand.u32 %s49, 1
        %s903 = scalar_lea.sflag [#allocation9], %s902
        %s904 = sand.u32 %s135, 1
        %s905 = smul.addr %s904, 16
        %s906 = scalar_lea.vmem [#allocation8], %s905
        %p907 = pneg %p148
        %p908 = pneg %p145
        %s909 = sand.u32 %s49, 1
        %s910 = scalar_lea.sflag [#allocation9], %s909
        %s911 = sand.u32 %s161, 1
        %s912 = smul.addr %s911, 32
        %s913 = scalar_lea.vmem [#allocation10], %s912
        %p914 = pneg %p174
        %p915 = pneg %p171
        %p916 = pneg %p195
        %p917 = pneg %p192
        %p918 = pneg %p216
        %p919 = pneg %p213
        %p920 = pneg %p237
        %p921 = pneg %p234
        %p922 = pneg %p258
        %p923 = pneg %p255
        %p924 = pneg %p279
        %p925 = pneg %p276
        %p926 = pneg %p300
        %p927 = pneg %p297
        %p928 = pneg %p321
        %p929 = pneg %p318
        %p930 = pneg %p342
        %p931 = pneg %p339
        %p932 = pneg %p363
        %p933 = pneg %p360
        %p934 = pneg %p384
        %p935 = pneg %p381
        %p936 = pneg %p405
        %p937 = pneg %p402
        %p938 = pneg %p426
        %p939 = pneg %p423
        %p940 = pneg %p447
        %p941 = pneg %p444
        %p942 = pneg %p468
        %p943 = pneg %p465
        %p944 = pneg %p489
        %p945 = pneg %p486
        %p946 = pneg %p510
        %p947 = pneg %p507
        %p948 = pneg %p531
        %p949 = pneg %p528
        %p950 = pneg %p552
        %p951 = pneg %p549
        %p952 = pneg %p578
        %p953 = pneg %p575
        %s954 = sand.u32 %s565, 1
        %s955 = scalar_lea.sflag [#allocation4], %s954
        %s956 = sand.u32 %s565, 1
        %s957 = smul.addr %s956, 8
        %s958 = scalar_lea.vmem [#allocation19], %s957
        %s959 = smul.u32 2, %s49
        %s960 = smul.u32 2, %s49
        %s961 = smul.u32 2, %s49
        %s962 = smul.u32 2, %s49
        %s963 = smul.u32 2, %s49
        %s964 = smul.u32 2, %s49
        %v966 = vld [vmem:[%s820] sm:$0xff]
        %v967 = vld [vmem:[%s820 + $0x8] sm:$0xff]
        %v968 = vld [vmem:[#allocation11] sm:$0xf]
        %v969 = vld [vmem:[#allocation11 + $0x4] sm:$0xf]
        %v970 = vld [vmem:[#allocation11 + $0x8] sm:$0xf]
        %v971 = vld [vmem:[#allocation11 + $0xc] sm:$0xf]
        %v972 = vld [vmem:[#allocation11 + $0x10] sm:$0xf]
        %v973 = vld [vmem:[#allocation11 + $0x14] sm:$0xf]
        %v974 = vld [vmem:[#allocation11 + $0x18] sm:$0xf]
        %v975 = vld [vmem:[#allocation11 + $0x1c] sm:$0xf]
        %v976 = vld [vmem:[#allocation11 + $0x20] sm:$0xf]
        %v977 = vld [vmem:[#allocation11 + $0x24] sm:$0xf]
        %v978 = vld [vmem:[#allocation11 + $0x28] sm:$0xf]
        %v979 = vld [vmem:[#allocation11 + $0x2c] sm:$0xf]
        %v980 = vld [vmem:[#allocation11 + $0x30] sm:$0xf]
        %v981 = vld [vmem:[#allocation11 + $0x34] sm:$0xf]
        %v982 = vld [vmem:[#allocation11 + $0x38] sm:$0xf]
        %v983 = vld [vmem:[#allocation11 + $0x3c] sm:$0xf]
        %v984 = vld [vmem:[#allocation11 + $0x40] sm:$0xf]
        %v985 = vld [vmem:[#allocation11 + $0x44] sm:$0xf]
        %v986 = vld [vmem:[#allocation11 + $0x48] sm:$0xf]
        %v987 = vld [vmem:[#allocation11 + $0x4c] sm:$0xf]
        %v988 = vld [vmem:[#allocation11 + $0x50] sm:$0xf]
        %v989 = vld [vmem:[#allocation11 + $0x54] sm:$0xf]
        %v990 = vld [vmem:[#allocation11 + $0x58] sm:$0xf]
        %v991 = vld [vmem:[#allocation11 + $0x5c] sm:$0xf]
        %v992 = vld [vmem:[#allocation11 + $0x60] sm:$0xf]
        %v993 = vld [vmem:[#allocation11 + $0x64] sm:$0xf]
        %v994 = vld [vmem:[#allocation11 + $0x68] sm:$0xf]
        %v995 = vld [vmem:[#allocation11 + $0x6c] sm:$0xf]
        %v996 = vld [vmem:[#allocation11 + $0x70] sm:$0xf]
        %v997 = vld [vmem:[#allocation11 + $0x74] sm:$0xf]
        %v998 = vld [vmem:[#allocation11 + $0x78] sm:$0xf]
        %v999 = vld [vmem:[#allocation11 + $0x7c] sm:$0xf]
        %v1000 = vld [vmem:[%s6] sm:$0x1]
        %v1002 = vlaneseq
        %v1003 = vshrl.u32 %v1002, 7
        %v1004 = vsub.s32 0, %v1003
        %v1005 = vrot.slane %v1000, %v1004
        %v1009 = vunpack.c.l.b16 %v966
        %v1010 = vunpack.c.h.b16 %v966
        %v1011 = vunpack.c.l.b16 %v967
        %v1012 = vunpack.c.h.b16 %v967
        %v1013 = vpack.c.b16 %v1011, %v1009
        %v1014 = vpack.c.b16 %v1012, %v1010
        %v1049 = vunpack.c.l.b16 %v968
        %v1050 = vunpack.c.l.b16 %v969
        %v1051 = vunpack.c.l.b16 %v970
        %v1052 = vunpack.c.l.b16 %v971
        %v1053 = vunpack.c.l.b16 %v972
        %v1054 = vunpack.c.l.b16 %v973
        %v1055 = vunpack.c.l.b16 %v974
        %v1056 = vunpack.c.l.b16 %v975
        %v1057 = vunpack.c.l.b16 %v976
        %v1058 = vunpack.c.l.b16 %v977
        %v1059 = vunpack.c.l.b16 %v978
        %v1060 = vunpack.c.l.b16 %v979
        %v1061 = vunpack.c.l.b16 %v980
        %v1062 = vunpack.c.l.b16 %v981
        %v1063 = vunpack.c.l.b16 %v982
        %v1064 = vunpack.c.l.b16 %v983
        %v1065 = vunpack.c.l.b16 %v984
        %v1066 = vunpack.c.l.b16 %v985
        %v1067 = vunpack.c.l.b16 %v986
        %v1068 = vunpack.c.l.b16 %v987
        %v1069 = vunpack.c.l.b16 %v988
        %v1070 = vunpack.c.l.b16 %v989
        %v1071 = vunpack.c.l.b16 %v990
        %v1072 = vunpack.c.l.b16 %v991
        %v1073 = vunpack.c.l.b16 %v992
        %v1074 = vunpack.c.l.b16 %v993
        %v1075 = vunpack.c.l.b16 %v994
        %v1076 = vunpack.c.l.b16 %v995
        %v1077 = vunpack.c.l.b16 %v996
        %v1078 = vunpack.c.l.b16 %v997
        %v1079 = vunpack.c.l.b16 %v998
        %v1080 = vunpack.c.l.b16 %v999
        %v1081 = vpack.c.b16 %v1050, %v1049
        %v1082 = vpack.c.b16 %v1052, %v1051
        %v1083 = vpack.c.b16 %v1054, %v1053
        %v1084 = vpack.c.b16 %v1056, %v1055
        %v1085 = vpack.c.b16 %v1058, %v1057
        %v1086 = vpack.c.b16 %v1060, %v1059
        %v1087 = vpack.c.b16 %v1062, %v1061
        %v1088 = vpack.c.b16 %v1064, %v1063
        %v1089 = vpack.c.b16 %v1066, %v1065
        %v1090 = vpack.c.b16 %v1068, %v1067
        %v1091 = vpack.c.b16 %v1070, %v1069
        %v1092 = vpack.c.b16 %v1072, %v1071
        %v1093 = vpack.c.b16 %v1074, %v1073
        %v1094 = vpack.c.b16 %v1076, %v1075
        %v1095 = vpack.c.b16 %v1078, %v1077
        %v1096 = vpack.c.b16 %v1080, %v1079
        %1113 = vmatprep.subr.bf16.mxu0 0
        %1114 = vmatpush1.bf16.msra.mxu0 %v1081
        %1115 = vmatprep.subr.bf16.mxu0 0
        %1116 = vmatpush1.bf16.msra.mxu0 %v1082
        %1117 = vmatprep.subr.bf16.mxu0 0
        %1118 = vmatpush1.bf16.msra.mxu0 %v1083
        %1119 = vmatprep.subr.bf16.mxu0 0
        %1120 = vmatpush1.bf16.msra.mxu0 %v1084
        %1121 = vmatprep.subr.bf16.mxu0 0
        %1122 = vmatpush1.bf16.msra.mxu0 %v1085
        %1123 = vmatprep.subr.bf16.mxu0 0
        %1124 = vmatpush1.bf16.msra.mxu0 %v1086
        %1125 = vmatprep.subr.bf16.mxu0 0
        %1126 = vmatpush1.bf16.msra.mxu0 %v1087
        %1127 = vmatprep.subr.bf16.mxu0 0
        %1128 = vmatpush1.bf16.msra.mxu0 %v1088
        %1129 = vmatprep.subr.bf16.mxu0 0
        %1130 = vmatpush1.bf16.msra.mxu0 %v1089
        %1131 = vmatprep.subr.bf16.mxu0 0
        %1132 = vmatpush1.bf16.msra.mxu0 %v1090
        %1133 = vmatprep.subr.bf16.mxu0 0
        %1134 = vmatpush1.bf16.msra.mxu0 %v1091
        %1135 = vmatprep.subr.bf16.mxu0 0
        %1136 = vmatpush1.bf16.msra.mxu0 %v1092
        %1137 = vmatprep.subr.bf16.mxu0 0
        %1138 = vmatpush1.bf16.msra.mxu0 %v1093
        %1139 = vmatprep.subr.bf16.mxu0 0
        %1140 = vmatpush1.bf16.msra.mxu0 %v1094
        %1141 = vmatprep.subr.bf16.mxu0 0
        %1142 = vmatpush1.bf16.msra.mxu0 %v1095
        %1143 = vmatprep.subr.bf16.mxu0 0
        %1144 = vmatpush1.bf16.msra.mxu0 %v1096
        %1145 = vmatprep.mubr.bf16.mxu0 %v1014
        %1146 = vmatmul.mubr.bf16.gmra.mrb[0].mxu0 %v1013
        %v1147 = vpop.f32.mrb[0].mxu0
        %v1148 = vadd.f32 %v1005, %v1147
        %v1149 = vpop.f32.mrb[0].mxu0
        %v1150 = vpop.f32.mrb[0].mxu0
        %v1151 = vadd.f32 %v1005, %v1150
        %v1152 = vpop.f32.mrb[0].mxu0
        %1153 = vdwg.mxu0
        %v1154 = vmax.f32 %v1148, 0.0
        %v1155 = vmax.f32 %v1151, 0.0
        %v1156 = vpack.c.bf16 %v1155, %v1154
        %v1157 = vld [vmem:[%s829] sm:$0xf]
        %v1158 = vld [vmem:[%s829 + $0x4] sm:$0xf]
        %v1159 = vld [vmem:[%s7] sm:$0x1]
        %v1161 = vpack.i.b16 %v1159, %v1159
        %v1163 = vlaneseq
        %v1164 = vshrl.u32 %v1163, 7
        %v1165 = vsub.s32 0, %v1164
        %v1166 = vrot.slane %v1161, %v1165
        %v1168 = vunpack.c.l.b16 %v1166
        %v1169 = vpack.c.b16 %v1168, %v1168
        %v1171 = vmul.bf16 %v1157, %v1169
        %v1172 = vmul.bf16 %v1158, %v1169
        %v1173 = vld [vmem:[%s8] sm:$0x1]
        %v1175 = vpack.i.b16 %v1173, %v1173
        %v1177 = vlaneseq
        %v1178 = vshrl.u32 %v1177, 7
        %v1179 = vsub.s32 0, %v1178
        %v1180 = vrot.slane %v1175, %v1179
        %v1182 = vunpack.c.l.b16 %v1180
        %v1183 = vpack.c.b16 %v1182, %v1182
        %v1185 = vadd.bf16 %v1171, %v1183
        %v1186 = vadd.bf16 %v1172, %v1183
        %v1187 = vmax.bf16 %v1185, 0
        %v1188 = vmax.bf16 %v1186, 0
        %v1190 = vunpack.c.l.b16 %v1156
        %v1191 = vunpack.c.h.b16 %v1156
        %v1192 = vpack.c.b16 %v1190, %v1190
        %v1193 = vpack.c.b16 %v1191, %v1191
        %v1196 = vadd.bf16 %v1187, %v1192
        %v1197 = vadd.bf16 %v1188, %v1193
        %v1198 = vld [vmem:[#allocation13] sm:$0xf]
        %v1199 = vld [vmem:[#allocation13 + $0x4] sm:$0xf]
        %v1200 = vld [vmem:[#allocation13 + $0x8] sm:$0xf]
        %v1201 = vld [vmem:[#allocation13 + $0xc] sm:$0xf]
        %v1202 = vld [vmem:[#allocation13 + $0x10] sm:$0xf]
        %v1203 = vld [vmem:[#allocation13 + $0x14] sm:$0xf]
        %v1204 = vld [vmem:[#allocation13 + $0x18] sm:$0xf]
        %v1205 = vld [vmem:[#allocation13 + $0x1c] sm:$0xf]
        %v1206 = vld [vmem:[#allocation13 + $0x20] sm:$0xf]
        %v1207 = vld [vmem:[#allocation13 + $0x24] sm:$0xf]
        %v1208 = vld [vmem:[#allocation13 + $0x28] sm:$0xf]
        %v1209 = vld [vmem:[#allocation13 + $0x2c] sm:$0xf]
        %v1210 = vld [vmem:[#allocation13 + $0x30] sm:$0xf]
        %v1211 = vld [vmem:[#allocation13 + $0x34] sm:$0xf]
        %v1212 = vld [vmem:[#allocation13 + $0x38] sm:$0xf]
        %v1213 = vld [vmem:[#allocation13 + $0x3c] sm:$0xf]
        %v1214 = vld [vmem:[%s10] sm:$0x1]
        %v1216 = vlaneseq
        %v1217 = vshrl.u32 %v1216, 7
        %v1218 = vsub.s32 0, %v1217
        %v1219 = vrot.slane %v1214, %v1218
        %v1223 = vunpack.c.l.b16 %v1196
        %v1224 = vunpack.c.l.b16 %v1197
        %v1225 = vpack.c.b16 %v1224, %v1223
        %v1243 = vunpack.c.l.b16 %v1198
        %v1244 = vunpack.c.l.b16 %v1199
        %v1245 = vunpack.c.l.b16 %v1200
        %v1246 = vunpack.c.l.b16 %v1201
        %v1247 = vunpack.c.l.b16 %v1202
        %v1248 = vunpack.c.l.b16 %v1203
        %v1249 = vunpack.c.l.b16 %v1204
        %v1250 = vunpack.c.l.b16 %v1205
        %v1251 = vunpack.c.l.b16 %v1206
        %v1252 = vunpack.c.l.b16 %v1207
        %v1253 = vunpack.c.l.b16 %v1208
        %v1254 = vunpack.c.l.b16 %v1209
        %v1255 = vunpack.c.l.b16 %v1210
        %v1256 = vunpack.c.l.b16 %v1211
        %v1257 = vunpack.c.l.b16 %v1212
        %v1258 = vunpack.c.l.b16 %v1213
        %v1259 = vpack.c.b16 %v1244, %v1243
        %v1260 = vpack.c.b16 %v1246, %v1245
        %v1261 = vpack.c.b16 %v1248, %v1247
        %v1262 = vpack.c.b16 %v1250, %v1249
        %v1263 = vpack.c.b16 %v1252, %v1251
        %v1264 = vpack.c.b16 %v1254, %v1253
        %v1265 = vpack.c.b16 %v1256, %v1255
        %v1266 = vpack.c.b16 %v1258, %v1257
        %1275 = vmatprep.subr.bf16.mxu0 0
        %1276 = vmatpush1.bf16.msra.mxu0 %v1259
        %1277 = vmatprep.subr.bf16.mxu0 0
        %1278 = vmatpush1.bf16.msra.mxu0 %v1260
        %1279 = vmatprep.subr.bf16.mxu0 0
        %1280 = vmatpush1.bf16.msra.mxu0 %v1261
        %1281 = vmatprep.subr.bf16.mxu0 0
        %1282 = vmatpush1.bf16.msra.mxu0 %v1262
        %1283 = vmatprep.subr.bf16.mxu0 0
        %1284 = vmatpush1.bf16.msra.mxu0 %v1263
        %1285 = vmatprep.subr.bf16.mxu0 0
        %1286 = vmatpush1.bf16.msra.mxu0 %v1264
        %1287 = vmatprep.subr.bf16.mxu0 0
        %1288 = vmatpush1.bf16.msra.mxu0 %v1265
        %1289 = vmatprep.subr.bf16.mxu0 0
        %1290 = vmatpush1.bf16.msra.mxu0 %v1266
        %1291 = vmatprep.subr.bf16.mxu0 0
        %1292 = vmatpush1.bf16.msra.mxu0 0
        %1293 = vmatprep.subr.bf16.mxu0 0
        %1294 = vmatpush1.bf16.msra.mxu0 0
        %1295 = vmatprep.subr.bf16.mxu0 0
        %1296 = vmatpush1.bf16.msra.mxu0 0
        %1297 = vmatprep.subr.bf16.mxu0 0
        %1298 = vmatpush1.bf16.msra.mxu0 0
        %1299 = vmatprep.subr.bf16.mxu0 0
        %1300 = vmatpush1.bf16.msra.mxu0 0
        %1301 = vmatprep.subr.bf16.mxu0 0
        %1302 = vmatpush1.bf16.msra.mxu0 0
        %1303 = vmatprep.subr.bf16.mxu0 0
        %1304 = vmatpush1.bf16.msra.mxu0 0
        %1305 = vmatprep.subr.bf16.mxu0 0
        %1306 = vmatpush1.bf16.msra.mxu0 0
        %1307 = vmatprep.mubr.bf16.mxu0 0
        %1308 = vmatmul.mubr.bf16.gmra.mrb[0].mxu0 %v1225
        %v1309 = vpop.f32.mrb[0].mxu0
        %v1310 = vadd.f32 %v1219, %v1309
        %v1311 = vpop.f32.mrb[0].mxu0
        %v1312 = vpop.f32.mrb[0].mxu0
        %v1313 = vadd.f32 %v1219, %v1312
        %v1314 = vpop.f32.mrb[0].mxu0
        %1315 = vdwg.mxu0
        %v1316 = vmax.f32 %v1310, 0.0
        %v1317 = vmax.f32 %v1313, 0.0
        %v1318 = vpack.c.bf16 %v1317, %v1316
        %v1319 = vld [vmem:[%s838] sm:$0xf]
        %v1320 = vld [vmem:[%s838 + $0x4] sm:$0xf]
        %v1321 = vld [vmem:[%s11] sm:$0x1]
        %v1323 = vpack.i.b16 %v1321, %v1321
        %v1325 = vlaneseq
        %v1326 = vshrl.u32 %v1325, 7
        %v1327 = vsub.s32 0, %v1326
        %v1328 = vrot.slane %v1323, %v1327
        %v1330 = vunpack.c.l.b16 %v1328
        %v1331 = vpack.c.b16 %v1330, %v1330
        %v1333 = vmul.bf16 %v1319, %v1331
        %v1334 = vmul.bf16 %v1320, %v1331
        %v1335 = vld [vmem:[%s12] sm:$0x1]
        %v1337 = vpack.i.b16 %v1335, %v1335
        %v1339 = vlaneseq
        %v1340 = vshrl.u32 %v1339, 7
        %v1341 = vsub.s32 0, %v1340
        %v1342 = vrot.slane %v1337, %v1341
        %v1344 = vunpack.c.l.b16 %v1342
        %v1345 = vpack.c.b16 %v1344, %v1344
        %v1347 = vadd.bf16 %v1333, %v1345
        %v1348 = vadd.bf16 %v1334, %v1345
        %v1349 = vmax.bf16 %v1347, 0
        %v1350 = vmax.bf16 %v1348, 0
        %v1352 = vunpack.c.l.b16 %v1318
        %v1353 = vunpack.c.h.b16 %v1318
        %v1354 = vpack.c.b16 %v1352, %v1352
        %v1355 = vpack.c.b16 %v1353, %v1353
        %v1358 = vadd.bf16 %v1349, %v1354
        %v1359 = vadd.bf16 %v1350, %v1355
        %v1360 = vld [vmem:[#allocation14] sm:$0xff]
        %v1361 = vld [vmem:[#allocation14 + $0x8] sm:$0xff]
        %v1362 = vld [vmem:[#allocation14 + $0x10] sm:$0xff]
        %v1363 = vld [vmem:[#allocation14 + $0x18] sm:$0xff]
        %v1364 = vld [vmem:[#allocation14 + $0x20] sm:$0xff]
        %v1365 = vld [vmem:[#allocation14 + $0x28] sm:$0xff]
        %v1366 = vld [vmem:[#allocation14 + $0x30] sm:$0xff]
        %v1367 = vld [vmem:[#allocation14 + $0x38] sm:$0xff]
        %v1368 = vld [vmem:[#allocation14 + $0x40] sm:$0xff]
        %v1369 = vld [vmem:[#allocation14 + $0x48] sm:$0xff]
        %v1370 = vld [vmem:[#allocation14 + $0x50] sm:$0xff]
        %v1371 = vld [vmem:[#allocation14 + $0x58] sm:$0xff]
        %v1372 = vld [vmem:[#allocation14 + $0x60] sm:$0xff]
        %v1373 = vld [vmem:[#allocation14 + $0x68] sm:$0xff]
        %v1374 = vld [vmem:[#allocation14 + $0x70] sm:$0xff]
        %v1375 = vld [vmem:[#allocation14 + $0x78] sm:$0xff]
        %v1376 = vld [vmem:[%s14] sm:$0x3]
        %v1378 = vlaneseq
        %v1379 = vshrl.u32 %v1378, 7
        %v1380 = vsub.s32 0, %v1379
        %v1381 = vrot.slane %v1376, %v1380
        %v1382 = vlaneseq
        %v1383 = vshrl.u32 %v1382, 7
        %v1384 = vsub.s32 1, %v1383
        %v1385 = vrot.slane %v1376, %v1384
        %v1390 = vunpack.c.l.b16 %v1358
        %v1391 = vunpack.c.l.b16 %v1359
        %v1392 = vpack.c.b16 %v1391, %v1390
        %v1410 = vunpack.c.l.b16 %v1360
        %v1411 = vunpack.c.h.b16 %v1360
        %v1412 = vunpack.c.l.b16 %v1361
        %v1413 = vunpack.c.h.b16 %v1361
        %v1414 = vunpack.c.l.b16 %v1362
        %v1415 = vunpack.c.h.b16 %v1362
        %v1416 = vunpack.c.l.b16 %v1363
        %v1417 = vunpack.c.h.b16 %v1363
        %v1418 = vunpack.c.l.b16 %v1364
        %v1419 = vunpack.c.h.b16 %v1364
        %v1420 = vunpack.c.l.b16 %v1365
        %v1421 = vunpack.c.h.b16 %v1365
        %v1422 = vunpack.c.l.b16 %v1366
        %v1423 = vunpack.c.h.b16 %v1366
        %v1424 = vunpack.c.l.b16 %v1367
        %v1425 = vunpack.c.h.b16 %v1367
        %v1426 = vunpack.c.l.b16 %v1368
        %v1427 = vunpack.c.h.b16 %v1368
        %v1428 = vunpack.c.l.b16 %v1369
        %v1429 = vunpack.c.h.b16 %v1369
        %v1430 = vunpack.c.l.b16 %v1370
        %v1431 = vunpack.c.h.b16 %v1370
        %v1432 = vunpack.c.l.b16 %v1371
        %v1433 = vunpack.c.h.b16 %v1371
        %v1434 = vunpack.c.l.b16 %v1372
        %v1435 = vunpack.c.h.b16 %v1372
        %v1436 = vunpack.c.l.b16 %v1373
        %v1437 = vunpack.c.h.b16 %v1373
        %v1438 = vunpack.c.l.b16 %v1374
        %v1439 = vunpack.c.h.b16 %v1374
        %v1440 = vunpack.c.l.b16 %v1375
        %v1441 = vunpack.c.h.b16 %v1375
        %v1442 = vpack.c.b16 %v1412, %v1410
        %v1443 = vpack.c.b16 %v1413, %v1411
        %v1444 = vpack.c.b16 %v1416, %v1414
        %v1445 = vpack.c.b16 %v1417, %v1415
        %v1446 = vpack.c.b16 %v1420, %v1418
        %v1447 = vpack.c.b16 %v1421, %v1419
        %v1448 = vpack.c.b16 %v1424, %v1422
        %v1449 = vpack.c.b16 %v1425, %v1423
        %v1450 = vpack.c.b16 %v1428, %v1426
        %v1451 = vpack.c.b16 %v1429, %v1427
        %v1452 = vpack.c.b16 %v1432, %v1430
        %v1453 = vpack.c.b16 %v1433, %v1431
        %v1454 = vpack.c.b16 %v1436, %v1434
        %v1455 = vpack.c.b16 %v1437, %v1435
        %v1456 = vpack.c.b16 %v1440, %v1438
        %v1457 = vpack.c.b16 %v1441, %v1439
        %1474 = vmatprep.subr.bf16.mxu0 %v1443
        %1475 = vmatpush1.bf16.msra.mxu0 %v1442
        %1476 = vmatprep.subr.bf16.mxu0 %v1445
        %1477 = vmatpush1.bf16.msra.mxu0 %v1444
        %1478 = vmatprep.subr.bf16.mxu0 %v1447
        %1479 = vmatpush1.bf16.msra.mxu0 %v1446
        %1480 = vmatprep.subr.bf16.mxu0 %v1449
        %1481 = vmatpush1.bf16.msra.mxu0 %v1448
        %1482 = vmatprep.subr.bf16.mxu0 %v1451
        %1483 = vmatpush1.bf16.msra.mxu0 %v1450
        %1484 = vmatprep.subr.bf16.mxu0 %v1453
        %1485 = vmatpush1.bf16.msra.mxu0 %v1452
        %1486 = vmatprep.subr.bf16.mxu0 %v1455
        %1487 = vmatpush1.bf16.msra.mxu0 %v1454
        %1488 = vmatprep.subr.bf16.mxu0 %v1457
        %1489 = vmatpush1.bf16.msra.mxu0 %v1456
        %1490 = vmatprep.subr.bf16.mxu0 0
        %1491 = vmatpush1.bf16.msra.mxu0 0
        %1492 = vmatprep.subr.bf16.mxu0 0
        %1493 = vmatpush1.bf16.msra.mxu0 0
        %1494 = vmatprep.subr.bf16.mxu0 0
        %1495 = vmatpush1.bf16.msra.mxu0 0
        %1496 = vmatprep.subr.bf16.mxu0 0
        %1497 = vmatpush1.bf16.msra.mxu0 0
        %1498 = vmatprep.subr.bf16.mxu0 0
        %1499 = vmatpush1.bf16.msra.mxu0 0
        %1500 = vmatprep.subr.bf16.mxu0 0
        %1501 = vmatpush1.bf16.msra.mxu0 0
        %1502 = vmatprep.subr.bf16.mxu0 0
        %1503 = vmatpush1.bf16.msra.mxu0 0
        %1504 = vmatprep.subr.bf16.mxu0 0
        %1505 = vmatpush1.bf16.msra.mxu0 0
        %1506 = vmatprep.mubr.bf16.mxu0 0
        %1507 = vmatmul.mubr.bf16.gmra.mrb[0].mxu0 %v1392
        %v1508 = vpop.f32.mrb[0].mxu0
        %v1509 = vadd.f32 %v1381, %v1508
        %v1510 = vpop.f32.mrb[0].mxu0
        %v1511 = vadd.f32 %v1385, %v1510
        %v1512 = vpop.f32.mrb[0].mxu0
        %v1513 = vadd.f32 %v1381, %v1512
        %v1514 = vpop.f32.mrb[0].mxu0
        %v1515 = vadd.f32 %v1385, %v1514
        %1516 = vdwg.mxu0
        %v1517 = vmax.f32 %v1509, 0.0
        %v1518 = vmax.f32 %v1511, 0.0
        %v1519 = vmax.f32 %v1513, 0.0
        %v1520 = vmax.f32 %v1515, 0.0
        %v1521 = vpack.c.bf16 %v1519, %v1517
        %v1522 = vpack.c.bf16 %v1520, %v1518
        %v1523 = vld [vmem:[%s847] sm:$0xff]
        %v1524 = vld [vmem:[%s847 + $0x8] sm:$0xff]
        %v1525 = vld [vmem:[%s15] sm:$0x3]
        %v1528 = vunpack.c.l.s4 1966171168
        %v1529 = vunpack.c.0.s8 %v1528
        %v1530 = vlaneseq
        %v1531 = vshrl.u32 %v1530, 7
        %v1532 = vsub.s32 %v1529, %v1531
        %v1533 = vrot.slane %v1525, %v1532
        %v1534 = vcombine.high %v1533, %v1533
        %v1536 = vunpack.c.l.s4 1966171168
        %v1537 = vunpack.c.0.s8 %v1536
        %v1538 = vlaneseq
        %v1539 = vshrl.u32 %v1538, 7
        %v1540 = vsub.s32 %v1537, %v1539
        %v1541 = vrot.slane %v1533, %v1540
        %v1543 = vunpack.c.l.s4 1966171168
        %v1544 = vunpack.c.0.s8 %v1543
        %v1545 = vlaneseq
        %v1546 = vshrl.u32 %v1545, 7
        %v1547 = vsub.s32 %v1544, %v1546
        %v1548 = vrot.slane %v1534, %v1547
        %v1550 = vpack.i.b16 %v1541, %v1541
        %v1552 = vlaneseq
        %v1553 = vshrl.u32 %v1552, 7
        %v1554 = vsub.s32 0, %v1553
        %v1555 = vrot.slane %v1550, %v1554
        %v1557 = vpack.i.b16 %v1548, %v1548
        %v1559 = vlaneseq
        %v1560 = vshrl.u32 %v1559, 7
        %v1561 = vsub.s32 0, %v1560
        %v1562 = vrot.slane %v1557, %v1561
        %v1565 = vunpack.c.l.b16 %v1555
        %v1566 = vunpack.c.l.b16 %v1562
        %v1567 = vpack.c.b16 %v1566, %v1565
        %v1569 = vmul.bf16 %v1523, %v1567
        %v1570 = vmul.bf16 %v1524, %v1567
        %v1571 = vld [vmem:[%s16] sm:$0x3]
        %v1574 = vunpack.c.l.s4 1966171168
        %v1575 = vunpack.c.0.s8 %v1574
        %v1576 = vlaneseq
        %v1577 = vshrl.u32 %v1576, 7
        %v1578 = vsub.s32 %v1575, %v1577
        %v1579 = vrot.slane %v1571, %v1578
        %v1580 = vcombine.high %v1579, %v1579
        %v1582 = vunpack.c.l.s4 1966171168
        %v1583 = vunpack.c.0.s8 %v1582
        %v1584 = vlaneseq
        %v1585 = vshrl.u32 %v1584, 7
        %v1586 = vsub.s32 %v1583, %v1585
        %v1587 = vrot.slane %v1579, %v1586
        %v1589 = vunpack.c.l.s4 1966171168
        %v1590 = vunpack.c.0.s8 %v1589
        %v1591 = vlaneseq
        %v1592 = vshrl.u32 %v1591, 7
        %v1593 = vsub.s32 %v1590, %v1592
        %v1594 = vrot.slane %v1580, %v1593
        %v1596 = vpack.i.b16 %v1587, %v1587
        %v1598 = vlaneseq
        %v1599 = vshrl.u32 %v1598, 7
        %v1600 = vsub.s32 0, %v1599
        %v1601 = vrot.slane %v1596, %v1600
        %v1603 = vpack.i.b16 %v1594, %v1594
        %v1605 = vlaneseq
        %v1606 = vshrl.u32 %v1605, 7
        %v1607 = vsub.s32 0, %v1606
        %v1608 = vrot.slane %v1603, %v1607
        %v1611 = vunpack.c.l.b16 %v1601
        %v1612 = vunpack.c.l.b16 %v1608
        %v1613 = vpack.c.b16 %v1612, %v1611
        %v1615 = vadd.bf16 %v1569, %v1613
        %v1616 = vadd.bf16 %v1570, %v1613
        %v1617 = vmax.bf16 %v1615, 0
        %v1618 = vmax.bf16 %v1616, 0
        %v1621 = vunpack.c.l.b16 %v1521
        %v1622 = vunpack.c.l.b16 %v1522
        %v1623 = vunpack.c.h.b16 %v1521
        %v1624 = vunpack.c.h.b16 %v1522
        %v1625 = vpack.c.b16 %v1622, %v1621
        %v1626 = vpack.c.b16 %v1624, %v1623
        %v1629 = vadd.bf16 %v1617, %v1625
        %v1630 = vadd.bf16 %v1618, %v1626
        %v1631 = vld [vmem:[#allocation16] sm:$0xff]
        %v1632 = vld [vmem:[#allocation16 + $0x8] sm:$0xff]
        %v1633 = vld [vmem:[#allocation16 + $0x10] sm:$0xff]
        %v1634 = vld [vmem:[#allocation16 + $0x18] sm:$0xff]
        %v1635 = vld [vmem:[#allocation16 + $0x20] sm:$0xff]
        %v1636 = vld [vmem:[#allocation16 + $0x28] sm:$0xff]
        %v1637 = vld [vmem:[#allocation16 + $0x30] sm:$0xff]
        %v1638 = vld [vmem:[#allocation16 + $0x38] sm:$0xff]
        %v1639 = vld [vmem:[#allocation16 + $0x40] sm:$0xff]
        %v1640 = vld [vmem:[#allocation16 + $0x48] sm:$0xff]
        %v1641 = vld [vmem:[#allocation16 + $0x50] sm:$0xff]
        %v1642 = vld [vmem:[#allocation16 + $0x58] sm:$0xff]
        %v1643 = vld [vmem:[#allocation16 + $0x60] sm:$0xff]
        %v1644 = vld [vmem:[#allocation16 + $0x68] sm:$0xff]
        %v1645 = vld [vmem:[#allocation16 + $0x70] sm:$0xff]
        %v1646 = vld [vmem:[#allocation16 + $0x78] sm:$0xff]
        %v1647 = vld [vmem:[#allocation16 + $0x80] sm:$0xff]
        %v1648 = vld [vmem:[#allocation16 + $0x88] sm:$0xff]
        %v1649 = vld [vmem:[#allocation16 + $0x90] sm:$0xff]
        %v1650 = vld [vmem:[#allocation16 + $0x98] sm:$0xff]
        %v1651 = vld [vmem:[#allocation16 + $0xa0] sm:$0xff]
        %v1652 = vld [vmem:[#allocation16 + $0xa8] sm:$0xff]
        %v1653 = vld [vmem:[#allocation16 + $0xb0] sm:$0xff]
        %v1654 = vld [vmem:[#allocation16 + $0xb8] sm:$0xff]
        %v1655 = vld [vmem:[#allocation16 + $0xc0] sm:$0xff]
        %v1656 = vld [vmem:[#allocation16 + $0xc8] sm:$0xff]
        %v1657 = vld [vmem:[#allocation16 + $0xd0] sm:$0xff]
        %v1658 = vld [vmem:[#allocation16 + $0xd8] sm:$0xff]
        %v1659 = vld [vmem:[#allocation16 + $0xe0] sm:$0xff]
        %v1660 = vld [vmem:[#allocation16 + $0xe8] sm:$0xff]
        %v1661 = vld [vmem:[#allocation16 + $0xf0] sm:$0xff]
        %v1662 = vld [vmem:[#allocation16 + $0xf8] sm:$0xff]
        %v1663 = vld [vmem:[#allocation16 + $0x100] sm:$0xff]
        %v1664 = vld [vmem:[#allocation16 + $0x108] sm:$0xff]
        %v1665 = vld [vmem:[#allocation16 + $0x110] sm:$0xff]
        %v1666 = vld [vmem:[#allocation16 + $0x118] sm:$0xff]
        %v1667 = vld [vmem:[#allocation16 + $0x120] sm:$0xff]
        %v1668 = vld [vmem:[#allocation16 + $0x128] sm:$0xff]
        %v1669 = vld [vmem:[#allocation16 + $0x130] sm:$0xff]
        %v1670 = vld [vmem:[#allocation16 + $0x138] sm:$0xff]
        %v1671 = vld [vmem:[#allocation16 + $0x140] sm:$0xff]
        %v1672 = vld [vmem:[#allocation16 + $0x148] sm:$0xff]
        %v1673 = vld [vmem:[#allocation16 + $0x150] sm:$0xff]
        %v1674 = vld [vmem:[#allocation16 + $0x158] sm:$0xff]
        %v1675 = vld [vmem:[#allocation16 + $0x160] sm:$0xff]
        %v1676 = vld [vmem:[#allocation16 + $0x168] sm:$0xff]
        %v1677 = vld [vmem:[#allocation16 + $0x170] sm:$0xff]
        %v1678 = vld [vmem:[#allocation16 + $0x178] sm:$0xff]
        %v1679 = vld [vmem:[#allocation16 + $0x180] sm:$0xff]
        %v1680 = vld [vmem:[#allocation16 + $0x188] sm:$0xff]
        %v1681 = vld [vmem:[#allocation16 + $0x190] sm:$0xff]
        %v1682 = vld [vmem:[#allocation16 + $0x198] sm:$0xff]
        %v1683 = vld [vmem:[#allocation16 + $0x1a0] sm:$0xff]
        %v1684 = vld [vmem:[#allocation16 + $0x1a8] sm:$0xff]
        %v1685 = vld [vmem:[#allocation16 + $0x1b0] sm:$0xff]
        %v1686 = vld [vmem:[#allocation16 + $0x1b8] sm:$0xff]
        %v1687 = vld [vmem:[#allocation16 + $0x1c0] sm:$0xff]
        %v1688 = vld [vmem:[#allocation16 + $0x1c8] sm:$0xff]
        %v1689 = vld [vmem:[#allocation16 + $0x1d0] sm:$0xff]
        %v1690 = vld [vmem:[#allocation16 + $0x1d8] sm:$0xff]
        %v1691 = vld [vmem:[#allocation16 + $0x1e0] sm:$0xff]
        %v1692 = vld [vmem:[#allocation16 + $0x1e8] sm:$0xff]
        %v1693 = vld [vmem:[#allocation16 + $0x1f0] sm:$0xff]
        %v1694 = vld [vmem:[#allocation16 + $0x1f8] sm:$0xff]
        %v1695 = vld [vmem:[%s18] sm:$0xf]
        %v1697 = vlaneseq
        %v1698 = vshrl.u32 %v1697, 7
        %v1699 = vsub.s32 0, %v1698
        %v1700 = vrot.slane %v1695, %v1699
        %v1701 = vlaneseq
        %v1702 = vshrl.u32 %v1701, 7
        %v1703 = vsub.s32 1, %v1702
        %v1704 = vrot.slane %v1695, %v1703
        %v1705 = vlaneseq
        %v1706 = vshrl.u32 %v1705, 7
        %v1707 = vsub.s32 2, %v1706
        %v1708 = vrot.slane %v1695, %v1707
        %v1709 = vlaneseq
        %v1710 = vshrl.u32 %v1709, 7
        %v1711 = vsub.s32 3, %v1710
        %v1712 = vrot.slane %v1695, %v1711
        %v1719 = vunpack.c.l.b16 %v1629
        %v1720 = vunpack.c.h.b16 %v1629
        %v1721 = vunpack.c.l.b16 %v1630
        %v1722 = vunpack.c.h.b16 %v1630
        %v1723 = vpack.c.b16 %v1721, %v1719
        %v1724 = vpack.c.b16 %v1722, %v1720
        %v1791 = vunpack.c.l.b16 %v1631
        %v1792 = vunpack.c.h.b16 %v1631
        %v1793 = vunpack.c.l.b16 %v1632
        %v1794 = vunpack.c.h.b16 %v1632
        %v1795 = vunpack.c.l.b16 %v1633
        %v1796 = vunpack.c.h.b16 %v1633
        %v1797 = vunpack.c.l.b16 %v1634
        %v1798 = vunpack.c.h.b16 %v1634
        %v1799 = vunpack.c.l.b16 %v1635
        %v1800 = vunpack.c.h.b16 %v1635
        %v1801 = vunpack.c.l.b16 %v1636
        %v1802 = vunpack.c.h.b16 %v1636
        %v1803 = vunpack.c.l.b16 %v1637
        %v1804 = vunpack.c.h.b16 %v1637
        %v1805 = vunpack.c.l.b16 %v1638
        %v1806 = vunpack.c.h.b16 %v1638
        %v1807 = vunpack.c.l.b16 %v1639
        %v1808 = vunpack.c.h.b16 %v1639
        %v1809 = vunpack.c.l.b16 %v1640
        %v1810 = vunpack.c.h.b16 %v1640
        %v1811 = vunpack.c.l.b16 %v1641
        %v1812 = vunpack.c.h.b16 %v1641
        %v1813 = vunpack.c.l.b16 %v1642
        %v1814 = vunpack.c.h.b16 %v1642
        %v1815 = vunpack.c.l.b16 %v1643
        %v1816 = vunpack.c.h.b16 %v1643
        %v1817 = vunpack.c.l.b16 %v1644
        %v1818 = vunpack.c.h.b16 %v1644
        %v1819 = vunpack.c.l.b16 %v1645
        %v1820 = vunpack.c.h.b16 %v1645
        %v1821 = vunpack.c.l.b16 %v1646
        %v1822 = vunpack.c.h.b16 %v1646
        %v1823 = vunpack.c.l.b16 %v1647
        %v1824 = vunpack.c.h.b16 %v1647
        %v1825 = vunpack.c.l.b16 %v1648
        %v1826 = vunpack.c.h.b16 %v1648
        %v1827 = vunpack.c.l.b16 %v1649
        %v1828 = vunpack.c.h.b16 %v1649
        %v1829 = vunpack.c.l.b16 %v1650
        %v1830 = vunpack.c.h.b16 %v1650
        %v1831 = vunpack.c.l.b16 %v1651
        %v1832 = vunpack.c.h.b16 %v1651
        %v1833 = vunpack.c.l.b16 %v1652
        %v1834 = vunpack.c.h.b16 %v1652
        %v1835 = vunpack.c.l.b16 %v1653
        %v1836 = vunpack.c.h.b16 %v1653
        %v1837 = vunpack.c.l.b16 %v1654
        %v1838 = vunpack.c.h.b16 %v1654
        %v1839 = vunpack.c.l.b16 %v1655
        %v1840 = vunpack.c.h.b16 %v1655
        %v1841 = vunpack.c.l.b16 %v1656
        %v1842 = vunpack.c.h.b16 %v1656
        %v1843 = vunpack.c.l.b16 %v1657
        %v1844 = vunpack.c.h.b16 %v1657
        %v1845 = vunpack.c.l.b16 %v1658
        %v1846 = vunpack.c.h.b16 %v1658
        %v1847 = vunpack.c.l.b16 %v1659
        %v1848 = vunpack.c.h.b16 %v1659
        %v1849 = vunpack.c.l.b16 %v1660
        %v1850 = vunpack.c.h.b16 %v1660
        %v1851 = vunpack.c.l.b16 %v1661
        %v1852 = vunpack.c.h.b16 %v1661
        %v1853 = vunpack.c.l.b16 %v1662
        %v1854 = vunpack.c.h.b16 %v1662
        %v1855 = vunpack.c.l.b16 %v1663
        %v1856 = vunpack.c.h.b16 %v1663
        %v1857 = vunpack.c.l.b16 %v1664
        %v1858 = vunpack.c.h.b16 %v1664
        %v1859 = vunpack.c.l.b16 %v1665
        %v1860 = vunpack.c.h.b16 %v1665
        %v1861 = vunpack.c.l.b16 %v1666
        %v1862 = vunpack.c.h.b16 %v1666
        %v1863 = vunpack.c.l.b16 %v1667
        %v1864 = vunpack.c.h.b16 %v1667
        %v1865 = vunpack.c.l.b16 %v1668
        %v1866 = vunpack.c.h.b16 %v1668
        %v1867 = vunpack.c.l.b16 %v1669
        %v1868 = vunpack.c.h.b16 %v1669
        %v1869 = vunpack.c.l.b16 %v1670
        %v1870 = vunpack.c.h.b16 %v1670
        %v1871 = vunpack.c.l.b16 %v1671
        %v1872 = vunpack.c.h.b16 %v1671
        %v1873 = vunpack.c.l.b16 %v1672
        %v1874 = vunpack.c.h.b16 %v1672
        %v1875 = vunpack.c.l.b16 %v1673
        %v1876 = vunpack.c.h.b16 %v1673
        %v1877 = vunpack.c.l.b16 %v1674
        %v1878 = vunpack.c.h.b16 %v1674
        %v1879 = vunpack.c.l.b16 %v1675
        %v1880 = vunpack.c.h.b16 %v1675
        %v1881 = vunpack.c.l.b16 %v1676
        %v1882 = vunpack.c.h.b16 %v1676
        %v1883 = vunpack.c.l.b16 %v1677
        %v1884 = vunpack.c.h.b16 %v1677
        %v1885 = vunpack.c.l.b16 %v1678
        %v1886 = vunpack.c.h.b16 %v1678
        %v1887 = vunpack.c.l.b16 %v1679
        %v1888 = vunpack.c.h.b16 %v1679
        %v1889 = vunpack.c.l.b16 %v1680
        %v1890 = vunpack.c.h.b16 %v1680
        %v1891 = vunpack.c.l.b16 %v1681
        %v1892 = vunpack.c.h.b16 %v1681
        %v1893 = vunpack.c.l.b16 %v1682
        %v1894 = vunpack.c.h.b16 %v1682
        %v1895 = vunpack.c.l.b16 %v1683
        %v1896 = vunpack.c.h.b16 %v1683
        %v1897 = vunpack.c.l.b16 %v1684
        %v1898 = vunpack.c.h.b16 %v1684
        %v1899 = vunpack.c.l.b16 %v1685
        %v1900 = vunpack.c.h.b16 %v1685
        %v1901 = vunpack.c.l.b16 %v1686
        %v1902 = vunpack.c.h.b16 %v1686
        %v1903 = vunpack.c.l.b16 %v1687
        %v1904 = vunpack.c.h.b16 %v1687
        %v1905 = vunpack.c.l.b16 %v1688
        %v1906 = vunpack.c.h.b16 %v1688
        %v1907 = vunpack.c.l.b16 %v1689
        %v1908 = vunpack.c.h.b16 %v1689
        %v1909 = vunpack.c.l.b16 %v1690
        %v1910 = vunpack.c.h.b16 %v1690
        %v1911 = vunpack.c.l.b16 %v1691
        %v1912 = vunpack.c.h.b16 %v1691
        %v1913 = vunpack.c.l.b16 %v1692
        %v1914 = vunpack.c.h.b16 %v1692
        %v1915 = vunpack.c.l.b16 %v1693
        %v1916 = vunpack.c.h.b16 %v1693
        %v1917 = vunpack.c.l.b16 %v1694
        %v1918 = vunpack.c.h.b16 %v1694
        %v1919 = vpack.c.b16 %v1795, %v1791
        %v1920 = vpack.c.b16 %v1796, %v1792
        %v1921 = vpack.c.b16 %v1797, %v1793
        %v1922 = vpack.c.b16 %v1798, %v1794
        %v1923 = vpack.c.b16 %v1803, %v1799
        %v1924 = vpack.c.b16 %v1804, %v1800
        %v1925 = vpack.c.b16 %v1805, %v1801
        %v1926 = vpack.c.b16 %v1806, %v1802
        %v1927 = vpack.c.b16 %v1811, %v1807
        %v1928 = vpack.c.b16 %v1812, %v1808
        %v1929 = vpack.c.b16 %v1813, %v1809
        %v1930 = vpack.c.b16 %v1814, %v1810
        %v1931 = vpack.c.b16 %v1819, %v1815
        %v1932 = vpack.c.b16 %v1820, %v1816
        %v1933 = vpack.c.b16 %v1821, %v1817
        %v1934 = vpack.c.b16 %v1822, %v1818
        %v1935 = vpack.c.b16 %v1827, %v1823
        %v1936 = vpack.c.b16 %v1828, %v1824
        %v1937 = vpack.c.b16 %v1829, %v1825
        %v1938 = vpack.c.b16 %v1830, %v1826
        %v1939 = vpack.c.b16 %v1835, %v1831
        %v1940 = vpack.c.b16 %v1836, %v1832
        %v1941 = vpack.c.b16 %v1837, %v1833
        %v1942 = vpack.c.b16 %v1838, %v1834
        %v1943 = vpack.c.b16 %v1843, %v1839
        %v1944 = vpack.c.b16 %v1844, %v1840
        %v1945 = vpack.c.b16 %v1845, %v1841
        %v1946 = vpack.c.b16 %v1846, %v1842
        %v1947 = vpack.c.b16 %v1851, %v1847
        %v1948 = vpack.c.b16 %v1852, %v1848
        %v1949 = vpack.c.b16 %v1853, %v1849
        %v1950 = vpack.c.b16 %v1854, %v1850
        %v1951 = vpack.c.b16 %v1859, %v1855
        %v1952 = vpack.c.b16 %v1860, %v1856
        %v1953 = vpack.c.b16 %v1861, %v1857
        %v1954 = vpack.c.b16 %v1862, %v1858
        %v1955 = vpack.c.b16 %v1867, %v1863
        %v1956 = vpack.c.b16 %v1868, %v1864
        %v1957 = vpack.c.b16 %v1869, %v1865
        %v1958 = vpack.c.b16 %v1870, %v1866
        %v1959 = vpack.c.b16 %v1875, %v1871
        %v1960 = vpack.c.b16 %v1876, %v1872
        %v1961 = vpack.c.b16 %v1877, %v1873
        %v1962 = vpack.c.b16 %v1878, %v1874
        %v1963 = vpack.c.b16 %v1883, %v1879
        %v1964 = vpack.c.b16 %v1884, %v1880
        %v1965 = vpack.c.b16 %v1885, %v1881
        %v1966 = vpack.c.b16 %v1886, %v1882
        %v1967 = vpack.c.b16 %v1891, %v1887
        %v1968 = vpack.c.b16 %v1892, %v1888
        %v1969 = vpack.c.b16 %v1893, %v1889
        %v1970 = vpack.c.b16 %v1894, %v1890
        %v1971 = vpack.c.b16 %v1899, %v1895
        %v1972 = vpack.c.b16 %v1900, %v1896
        %v1973 = vpack.c.b16 %v1901, %v1897
        %v1974 = vpack.c.b16 %v1902, %v1898
        %v1975 = vpack.c.b16 %v1907, %v1903
        %v1976 = vpack.c.b16 %v1908, %v1904
        %v1977 = vpack.c.b16 %v1909, %v1905
        %v1978 = vpack.c.b16 %v1910, %v1906
        %v1979 = vpack.c.b16 %v1915, %v1911
        %v1980 = vpack.c.b16 %v1916, %v1912
        %v1981 = vpack.c.b16 %v1917, %v1913
        %v1982 = vpack.c.b16 %v1918, %v1914
        %2047 = vmatprep.subr.bf16.mxu0 %v1920
        %2048 = vmatpush1.bf16.msra.mxu0 %v1919
        %2049 = vmatprep.subr.bf16.mxu0 %v1924
        %2050 = vmatpush1.bf16.msra.mxu0 %v1923
        %2051 = vmatprep.subr.bf16.mxu0 %v1928
        %2052 = vmatpush1.bf16.msra.mxu0 %v1927
        %2053 = vmatprep.subr.bf16.mxu0 %v1932
        %2054 = vmatpush1.bf16.msra.mxu0 %v1931
        %2055 = vmatprep.subr.bf16.mxu0 %v1936
        %2056 = vmatpush1.bf16.msra.mxu0 %v1935
        %2057 = vmatprep.subr.bf16.mxu0 %v1940
        %2058 = vmatpush1.bf16.msra.mxu0 %v1939
        %2059 = vmatprep.subr.bf16.mxu0 %v1944
        %2060 = vmatpush1.bf16.msra.mxu0 %v1943
        %2061 = vmatprep.subr.bf16.mxu0 %v1948
        %2062 = vmatpush1.bf16.msra.mxu0 %v1947
        %2063 = vmatprep.subr.bf16.mxu0 %v1952
        %2064 = vmatpush1.bf16.msra.mxu0 %v1951
        %2065 = vmatprep.subr.bf16.mxu0 %v1956
        %2066 = vmatpush1.bf16.msra.mxu0 %v1955
        %2067 = vmatprep.subr.bf16.mxu0 %v1960
        %2068 = vmatpush1.bf16.msra.mxu0 %v1959
        %2069 = vmatprep.subr.bf16.mxu0 %v1964
        %2070 = vmatpush1.bf16.msra.mxu0 %v1963
        %2071 = vmatprep.subr.bf16.mxu0 %v1968
        %2072 = vmatpush1.bf16.msra.mxu0 %v1967
        %2073 = vmatprep.subr.bf16.mxu0 %v1972
        %2074 = vmatpush1.bf16.msra.mxu0 %v1971
        %2075 = vmatprep.subr.bf16.mxu0 %v1976
        %2076 = vmatpush1.bf16.msra.mxu0 %v1975
        %2077 = vmatprep.subr.bf16.mxu0 %v1980
        %2078 = vmatpush1.bf16.msra.mxu0 %v1979
        %2079 = vmatprep.mubr.bf16.mxu0 %v1724
        %2080 = vmatmul.mubr.bf16.gmra.mrb[0].mxu0 %v1723
        %v2081 = vpop.f32.mrb[0].mxu0
        %v2082 = vadd.f32 %v1700, %v2081
        %v2083 = vpop.f32.mrb[0].mxu0
        %v2084 = vadd.f32 %v1704, %v2083
        %v2085 = vpop.f32.mrb[0].mxu0
        %v2086 = vadd.f32 %v1700, %v2085
        %v2087 = vpop.f32.mrb[0].mxu0
        %v2088 = vadd.f32 %v1704, %v2087
        %2089 = vdwg.mxu0
        %2090 = vmatprep.subr.bf16.mxu0 %v1922
        %2091 = vmatpush1.bf16.msra.mxu0 %v1921
        %2092 = vmatprep.subr.bf16.mxu0 %v1926
        %2093 = vmatpush1.bf16.msra.mxu0 %v1925
        %2094 = vmatprep.subr.bf16.mxu0 %v1930
        %2095 = vmatpush1.bf16.msra.mxu0 %v1929
        %2096 = vmatprep.subr.bf16.mxu0 %v1934
        %2097 = vmatpush1.bf16.msra.mxu0 %v1933
        %2098 = vmatprep.subr.bf16.mxu0 %v1938
        %2099 = vmatpush1.bf16.msra.mxu0 %v1937
        %2100 = vmatprep.subr.bf16.mxu0 %v1942
        %2101 = vmatpush1.bf16.msra.mxu0 %v1941
        %2102 = vmatprep.subr.bf16.mxu0 %v1946
        %2103 = vmatpush1.bf16.msra.mxu0 %v1945
        %2104 = vmatprep.subr.bf16.mxu0 %v1950
        %2105 = vmatpush1.bf16.msra.mxu0 %v1949
        %2106 = vmatprep.subr.bf16.mxu0 %v1954
        %2107 = vmatpush1.bf16.msra.mxu0 %v1953
        %2108 = vmatprep.subr.bf16.mxu0 %v1958
        %2109 = vmatpush1.bf16.msra.mxu0 %v1957
        %2110 = vmatprep.subr.bf16.mxu0 %v1962
        %2111 = vmatpush1.bf16.msra.mxu0 %v1961
        %2112 = vmatprep.subr.bf16.mxu0 %v1966
        %2113 = vmatpush1.bf16.msra.mxu0 %v1965
        %2114 = vmatprep.subr.bf16.mxu0 %v1970
        %2115 = vmatpush1.bf16.msra.mxu0 %v1969
        %2116 = vmatprep.subr.bf16.mxu0 %v1974
        %2117 = vmatpush1.bf16.msra.mxu0 %v1973
        %2118 = vmatprep.subr.bf16.mxu0 %v1978
        %2119 = vmatpush1.bf16.msra.mxu0 %v1977
        %2120 = vmatprep.subr.bf16.mxu0 %v1982
        %2121 = vmatpush1.bf16.msra.mxu0 %v1981
        %2122 = vmatprep.mubr.bf16.mxu0 %v1724
        %2123 = vmatmul.mubr.bf16.gmra.mrb[0].mxu0 %v1723
        %v2124 = vpop.f32.mrb[0].mxu0
        %v2125 = vadd.f32 %v1708, %v2124
        %v2126 = vpop.f32.mrb[0].mxu0
        %v2127 = vadd.f32 %v1712, %v2126
        %v2128 = vpop.f32.mrb[0].mxu0
        %v2129 = vadd.f32 %v1708, %v2128
        %v2130 = vpop.f32.mrb[0].mxu0
        %v2131 = vadd.f32 %v1712, %v2130
        %2132 = vdwg.mxu0
        %v2133 = vmax.f32 %v2082, 0.0
        %v2134 = vmax.f32 %v2084, 0.0
        %v2135 = vmax.f32 %v2125, 0.0
        %v2136 = vmax.f32 %v2127, 0.0
        %v2137 = vmax.f32 %v2086, 0.0
        %v2138 = vmax.f32 %v2088, 0.0
        %v2139 = vmax.f32 %v2129, 0.0
        %v2140 = vmax.f32 %v2131, 0.0
        %v2141 = vpack.c.bf16 %v2137, %v2133
        %v2142 = vpack.c.bf16 %v2138, %v2134
        %v2143 = vpack.c.bf16 %v2139, %v2135
        %v2144 = vpack.c.bf16 %v2140, %v2136
        %v2145 = vld [vmem:[%s856] sm:$0xff]
        %v2146 = vld [vmem:[%s856 + $0x8] sm:$0xff]
        %v2147 = vld [vmem:[%s856 + $0x10] sm:$0xff]
        %v2148 = vld [vmem:[%s856 + $0x18] sm:$0xff]
        %v2149 = vld [vmem:[%s19] sm:$0xf]
        %v2152 = vunpack.c.l.s4 1966171168
        %v2153 = vunpack.c.0.s8 %v2152
        %v2154 = vlaneseq
        %v2155 = vshrl.u32 %v2154, 7
        %v2156 = vsub.s32 %v2153, %v2155
        %v2157 = vrot.slane %v2149, %v2156
        %v2158 = vcombine.high %v2157, %v2157
        %v2160 = vunpack.c.l.s4 1966171168
        %v2161 = vunpack.c.0.s8 %v2160
        %v2162 = vlaneseq
        %v2163 = vshrl.u32 %v2162, 7
        %v2164 = vsub.s32 %v2161, %v2163
        %v2165 = vrot.slane %v2157, %v2164
        %v2167 = vunpack.c.l.s4 1966171168
        %v2168 = vunpack.c.0.s8 %v2167
        %v2169 = vlaneseq
        %v2170 = vshrl.u32 %v2169, 7
        %v2171 = vsub.s32 %v2168, %v2170
        %v2172 = vrot.slane %v2158, %v2171
        %v2173 = vcombine.high %v2165, %v2165
        %v2174 = vcombine.high %v2172, %v2172
        %v2176 = vpack.i.b16 %v2165, %v2165
        %v2178 = vlaneseq
        %v2179 = vshrl.u32 %v2178, 7
        %v2180 = vsub.s32 0, %v2179
        %v2181 = vrot.slane %v2176, %v2180
        %v2183 = vpack.i.b16 %v2172, %v2172
        %v2185 = vlaneseq
        %v2186 = vshrl.u32 %v2185, 7
        %v2187 = vsub.s32 0, %v2186
        %v2188 = vrot.slane %v2183, %v2187
        %v2190 = vpack.i.b16 %v2173, %v2173
        %v2192 = vlaneseq
        %v2193 = vshrl.u32 %v2192, 7
        %v2194 = vsub.s32 0, %v2193
        %v2195 = vrot.slane %v2190, %v2194
        %v2197 = vpack.i.b16 %v2174, %v2174
        %v2199 = vlaneseq
        %v2200 = vshrl.u32 %v2199, 7
        %v2201 = vsub.s32 0, %v2200
        %v2202 = vrot.slane %v2197, %v2201
        %v2207 = vunpack.c.l.b16 %v2181
        %v2208 = vunpack.c.l.b16 %v2188
        %v2209 = vunpack.c.l.b16 %v2195
        %v2210 = vunpack.c.l.b16 %v2202
        %v2211 = vpack.c.b16 %v2208, %v2207
        %v2212 = vpack.c.b16 %v2210, %v2209
        %v2215 = vmul.bf16 %v2145, %v2211
        %v2216 = vmul.bf16 %v2146, %v2212
        %v2217 = vmul.bf16 %v2147, %v2211
        %v2218 = vmul.bf16 %v2148, %v2212
        %v2219 = vld [vmem:[%s20] sm:$0xf]
        %v2222 = vunpack.c.l.s4 1966171168
        %v2223 = vunpack.c.0.s8 %v2222
        %v2224 = vlaneseq
        %v2225 = vshrl.u32 %v2224, 7
        %v2226 = vsub.s32 %v2223, %v2225
        %v2227 = vrot.slane %v2219, %v2226
        %v2228 = vcombine.high %v2227, %v2227
        %v2230 = vunpack.c.l.s4 1966171168
        %v2231 = vunpack.c.0.s8 %v2230
        %v2232 = vlaneseq
        %v2233 = vshrl.u32 %v2232, 7
        %v2234 = vsub.s32 %v2231, %v2233
        %v2235 = vrot.slane %v2227, %v2234
        %v2237 = vunpack.c.l.s4 1966171168
        %v2238 = vunpack.c.0.s8 %v2237
        %v2239 = vlaneseq
        %v2240 = vshrl.u32 %v2239, 7
        %v2241 = vsub.s32 %v2238, %v2240
        %v2242 = vrot.slane %v2228, %v2241
        %v2243 = vcombine.high %v2235, %v2235
        %v2244 = vcombine.high %v2242, %v2242
        %v2246 = vpack.i.b16 %v2235, %v2235
        %v2248 = vlaneseq
        %v2249 = vshrl.u32 %v2248, 7
        %v2250 = vsub.s32 0, %v2249
        %v2251 = vrot.slane %v2246, %v2250
        %v2253 = vpack.i.b16 %v2242, %v2242
        %v2255 = vlaneseq
        %v2256 = vshrl.u32 %v2255, 7
        %v2257 = vsub.s32 0, %v2256
        %v2258 = vrot.slane %v2253, %v2257
        %v2260 = vpack.i.b16 %v2243, %v2243
        %v2262 = vlaneseq
        %v2263 = vshrl.u32 %v2262, 7
        %v2264 = vsub.s32 0, %v2263
        %v2265 = vrot.slane %v2260, %v2264
        %v2267 = vpack.i.b16 %v2244, %v2244
        %v2269 = vlaneseq
        %v2270 = vshrl.u32 %v2269, 7
        %v2271 = vsub.s32 0, %v2270
        %v2272 = vrot.slane %v2267, %v2271
        %v2277 = vunpack.c.l.b16 %v2251
        %v2278 = vunpack.c.l.b16 %v2258
        %v2279 = vunpack.c.l.b16 %v2265
        %v2280 = vunpack.c.l.b16 %v2272
        %v2281 = vpack.c.b16 %v2278, %v2277
        %v2282 = vpack.c.b16 %v2280, %v2279
        %v2285 = vadd.bf16 %v2215, %v2281
        %v2286 = vadd.bf16 %v2216, %v2282
        %v2287 = vadd.bf16 %v2217, %v2281
        %v2288 = vadd.bf16 %v2218, %v2282
        %v2289 = vmax.bf16 %v2285, 0
        %v2290 = vmax.bf16 %v2286, 0
        %v2291 = vmax.bf16 %v2287, 0
        %v2292 = vmax.bf16 %v2288, 0
        %v2297 = vunpack.c.l.b16 %v2141
        %v2298 = vunpack.c.l.b16 %v2142
        %v2299 = vunpack.c.l.b16 %v2143
        %v2300 = vunpack.c.l.b16 %v2144
        %v2301 = vunpack.c.h.b16 %v2141
        %v2302 = vunpack.c.h.b16 %v2142
        %v2303 = vunpack.c.h.b16 %v2143
        %v2304 = vunpack.c.h.b16 %v2144
        %v2305 = vpack.c.b16 %v2298, %v2297
        %v2306 = vpack.c.b16 %v2300, %v2299
        %v2307 = vpack.c.b16 %v2302, %v2301
        %v2308 = vpack.c.b16 %v2304, %v2303
        %v2313 = vadd.bf16 %v2289, %v2305
        %v2314 = vadd.bf16 %v2290, %v2306
        %v2315 = vadd.bf16 %v2291, %v2307
        %v2316 = vadd.bf16 %v2292, %v2308
        %v2317 = vld [vmem:[#allocation17] sm:$0xf]
        %v2318 = vld [vmem:[#allocation17 + $0x4] sm:$0xf]
        %v2319 = vld [vmem:[#allocation17 + $0x8] sm:$0xf]
        %v2320 = vld [vmem:[#allocation17 + $0xc] sm:$0xf]
        %v2321 = vld [vmem:[#allocation17 + $0x10] sm:$0xf]
        %v2322 = vld [vmem:[#allocation17 + $0x14] sm:$0xf]
        %v2323 = vld [vmem:[#allocation17 + $0x18] sm:$0xf]
        %v2324 = vld [vmem:[#allocation17 + $0x1c] sm:$0xf]
        %v2325 = vld [vmem:[#allocation17 + $0x20] sm:$0xf]
        %v2326 = vld [vmem:[#allocation17 + $0x24] sm:$0xf]
        %v2327 = vld [vmem:[#allocation17 + $0x28] sm:$0xf]
        %v2328 = vld [vmem:[#allocation17 + $0x2c] sm:$0xf]
        %v2329 = vld [vmem:[#allocation17 + $0x30] sm:$0xf]
        %v2330 = vld [vmem:[#allocation17 + $0x34] sm:$0xf]
        %v2331 = vld [vmem:[#allocation17 + $0x38] sm:$0xf]
        %v2332 = vld [vmem:[#allocation17 + $0x3c] sm:$0xf]
        %v2333 = vld [vmem:[#allocation17 + $0x40] sm:$0xf]
        %v2334 = vld [vmem:[#allocation17 + $0x44] sm:$0xf]
        %v2335 = vld [vmem:[#allocation17 + $0x48] sm:$0xf]
        %v2336 = vld [vmem:[#allocation17 + $0x4c] sm:$0xf]
        %v2337 = vld [vmem:[#allocation17 + $0x50] sm:$0xf]
        %v2338 = vld [vmem:[#allocation17 + $0x54] sm:$0xf]
        %v2339 = vld [vmem:[#allocation17 + $0x58] sm:$0xf]
        %v2340 = vld [vmem:[#allocation17 + $0x5c] sm:$0xf]
        %v2341 = vld [vmem:[#allocation17 + $0x60] sm:$0xf]
        %v2342 = vld [vmem:[#allocation17 + $0x64] sm:$0xf]
        %v2343 = vld [vmem:[#allocation17 + $0x68] sm:$0xf]
        %v2344 = vld [vmem:[#allocation17 + $0x6c] sm:$0xf]
        %v2345 = vld [vmem:[#allocation17 + $0x70] sm:$0xf]
        %v2346 = vld [vmem:[#allocation17 + $0x74] sm:$0xf]
        %v2347 = vld [vmem:[#allocation17 + $0x78] sm:$0xf]
        %v2348 = vld [vmem:[#allocation17 + $0x7c] sm:$0xf]
        %v2349 = vld [vmem:[#allocation17 + $0x80] sm:$0xf]
        %v2350 = vld [vmem:[#allocation17 + $0x84] sm:$0xf]
        %v2351 = vld [vmem:[#allocation17 + $0x88] sm:$0xf]
        %v2352 = vld [vmem:[#allocation17 + $0x8c] sm:$0xf]
        %v2353 = vld [vmem:[#allocation17 + $0x90] sm:$0xf]
        %v2354 = vld [vmem:[#allocation17 + $0x94] sm:$0xf]
        %v2355 = vld [vmem:[#allocation17 + $0x98] sm:$0xf]
        %v2356 = vld [vmem:[#allocation17 + $0x9c] sm:$0xf]
        %v2357 = vld [vmem:[#allocation17 + $0xa0] sm:$0xf]
        %v2358 = vld [vmem:[#allocation17 + $0xa4] sm:$0xf]
        %v2359 = vld [vmem:[#allocation17 + $0xa8] sm:$0xf]
        %v2360 = vld [vmem:[#allocation17 + $0xac] sm:$0xf]
        %v2361 = vld [vmem:[#allocation17 + $0xb0] sm:$0xf]
        %v2362 = vld [vmem:[#allocation17 + $0xb4] sm:$0xf]
        %v2363 = vld [vmem:[#allocation17 + $0xb8] sm:$0xf]
        %v2364 = vld [vmem:[#allocation17 + $0xbc] sm:$0xf]
        %v2365 = vld [vmem:[#allocation17 + $0xc0] sm:$0xf]
        %v2366 = vld [vmem:[#allocation17 + $0xc4] sm:$0xf]
        %v2367 = vld [vmem:[#allocation17 + $0xc8] sm:$0xf]
        %v2368 = vld [vmem:[#allocation17 + $0xcc] sm:$0xf]
        %v2369 = vld [vmem:[#allocation17 + $0xd0] sm:$0xf]
        %v2370 = vld [vmem:[#allocation17 + $0xd4] sm:$0xf]
        %v2371 = vld [vmem:[#allocation17 + $0xd8] sm:$0xf]
        %v2372 = vld [vmem:[#allocation17 + $0xdc] sm:$0xf]
        %v2373 = vld [vmem:[#allocation17 + $0xe0] sm:$0xf]
        %v2374 = vld [vmem:[#allocation17 + $0xe4] sm:$0xf]
        %v2375 = vld [vmem:[#allocation17 + $0xe8] sm:$0xf]
        %v2376 = vld [vmem:[#allocation17 + $0xec] sm:$0xf]
        %v2377 = vld [vmem:[#allocation17 + $0xf0] sm:$0xf]
        %v2378 = vld [vmem:[#allocation17 + $0xf4] sm:$0xf]
        %v2379 = vld [vmem:[#allocation17 + $0xf8] sm:$0xf]
        %v2380 = vld [vmem:[#allocation17 + $0xfc] sm:$0xf]
        %v2381 = vld [vmem:[%s22] sm:$0x1]
        %v2383 = vlaneseq
        %v2384 = vshrl.u32 %v2383, 7
        %v2385 = vsub.s32 0, %v2384
        %v2386 = vrot.slane %v2381, %v2385
        %v2392 = vunpack.c.l.b16 %v2313
        %v2393 = vunpack.c.h.b16 %v2313
        %v2394 = vunpack.c.l.b16 %v2314
        %v2395 = vunpack.c.h.b16 %v2314
        %v2396 = vunpack.c.l.b16 %v2315
        %v2397 = vunpack.c.h.b16 %v2315
        %v2398 = vunpack.c.l.b16 %v2316
        %v2399 = vunpack.c.h.b16 %v2316
        %v2400 = vpack.c.b16 %v2396, %v2392
        %v2401 = vpack.c.b16 %v2397, %v2393
        %v2402 = vpack.c.b16 %v2398, %v2394
        %v2403 = vpack.c.b16 %v2399, %v2395
        %v2472 = vunpack.c.l.b16 %v2317
        %v2473 = vunpack.c.l.b16 %v2318
        %v2474 = vunpack.c.l.b16 %v2319
        %v2475 = vunpack.c.l.b16 %v2320
        %v2476 = vunpack.c.l.b16 %v2321
        %v2477 = vunpack.c.l.b16 %v2322
        %v2478 = vunpack.c.l.b16 %v2323
        %v2479 = vunpack.c.l.b16 %v2324
        %v2480 = vunpack.c.l.b16 %v2325
        %v2481 = vunpack.c.l.b16 %v2326
        %v2482 = vunpack.c.l.b16 %v2327
        %v2483 = vunpack.c.l.b16 %v2328
        %v2484 = vunpack.c.l.b16 %v2329
        %v2485 = vunpack.c.l.b16 %v2330
        %v2486 = vunpack.c.l.b16 %v2331
        %v2487 = vunpack.c.l.b16 %v2332
        %v2488 = vunpack.c.l.b16 %v2333
        %v2489 = vunpack.c.l.b16 %v2334
        %v2490 = vunpack.c.l.b16 %v2335
        %v2491 = vunpack.c.l.b16 %v2336
        %v2492 = vunpack.c.l.b16 %v2337
        %v2493 = vunpack.c.l.b16 %v2338
        %v2494 = vunpack.c.l.b16 %v2339
        %v2495 = vunpack.c.l.b16 %v2340
        %v2496 = vunpack.c.l.b16 %v2341
        %v2497 = vunpack.c.l.b16 %v2342
        %v2498 = vunpack.c.l.b16 %v2343
        %v2499 = vunpack.c.l.b16 %v2344
        %v2500 = vunpack.c.l.b16 %v2345
        %v2501 = vunpack.c.l.b16 %v2346
        %v2502 = vunpack.c.l.b16 %v2347
        %v2503 = vunpack.c.l.b16 %v2348
        %v2504 = vunpack.c.l.b16 %v2349
        %v2505 = vunpack.c.l.b16 %v2350
        %v2506 = vunpack.c.l.b16 %v2351
        %v2507 = vunpack.c.l.b16 %v2352
        %v2508 = vunpack.c.l.b16 %v2353
        %v2509 = vunpack.c.l.b16 %v2354
        %v2510 = vunpack.c.l.b16 %v2355
        %v2511 = vunpack.c.l.b16 %v2356
        %v2512 = vunpack.c.l.b16 %v2357
        %v2513 = vunpack.c.l.b16 %v2358
        %v2514 = vunpack.c.l.b16 %v2359
        %v2515 = vunpack.c.l.b16 %v2360
        %v2516 = vunpack.c.l.b16 %v2361
        %v2517 = vunpack.c.l.b16 %v2362
        %v2518 = vunpack.c.l.b16 %v2363
        %v2519 = vunpack.c.l.b16 %v2364
        %v2520 = vunpack.c.l.b16 %v2365
        %v2521 = vunpack.c.l.b16 %v2366
        %v2522 = vunpack.c.l.b16 %v2367
        %v2523 = vunpack.c.l.b16 %v2368
        %v2524 = vunpack.c.l.b16 %v2369
        %v2525 = vunpack.c.l.b16 %v2370
        %v2526 = vunpack.c.l.b16 %v2371
        %v2527 = vunpack.c.l.b16 %v2372
        %v2528 = vunpack.c.l.b16 %v2373
        %v2529 = vunpack.c.l.b16 %v2374
        %v2530 = vunpack.c.l.b16 %v2375
        %v2531 = vunpack.c.l.b16 %v2376
        %v2532 = vunpack.c.l.b16 %v2377
        %v2533 = vunpack.c.l.b16 %v2378
        %v2534 = vunpack.c.l.b16 %v2379
        %v2535 = vunpack.c.l.b16 %v2380
        %v2536 = vpack.c.b16 %v2473, %v2472
        %v2537 = vpack.c.b16 %v2475, %v2474
        %v2538 = vpack.c.b16 %v2477, %v2476
        %v2539 = vpack.c.b16 %v2479, %v2478
        %v2540 = vpack.c.b16 %v2481, %v2480
        %v2541 = vpack.c.b16 %v2483, %v2482
        %v2542 = vpack.c.b16 %v2485, %v2484
        %v2543 = vpack.c.b16 %v2487, %v2486
        %v2544 = vpack.c.b16 %v2489, %v2488
        %v2545 = vpack.c.b16 %v2491, %v2490
        %v2546 = vpack.c.b16 %v2493, %v2492
        %v2547 = vpack.c.b16 %v2495, %v2494
        %v2548 = vpack.c.b16 %v2497, %v2496
        %v2549 = vpack.c.b16 %v2499, %v2498
        %v2550 = vpack.c.b16 %v2501, %v2500
        %v2551 = vpack.c.b16 %v2503, %v2502
        %v2552 = vpack.c.b16 %v2505, %v2504
        %v2553 = vpack.c.b16 %v2507, %v2506
        %v2554 = vpack.c.b16 %v2509, %v2508
        %v2555 = vpack.c.b16 %v2511, %v2510
        %v2556 = vpack.c.b16 %v2513, %v2512
        %v2557 = vpack.c.b16 %v2515, %v2514
        %v2558 = vpack.c.b16 %v2517, %v2516
        %v2559 = vpack.c.b16 %v2519, %v2518
        %v2560 = vpack.c.b16 %v2521, %v2520
        %v2561 = vpack.c.b16 %v2523, %v2522
        %v2562 = vpack.c.b16 %v2525, %v2524
        %v2563 = vpack.c.b16 %v2527, %v2526
        %v2564 = vpack.c.b16 %v2529, %v2528
        %v2565 = vpack.c.b16 %v2531, %v2530
        %v2566 = vpack.c.b16 %v2533, %v2532
        %v2567 = vpack.c.b16 %v2535, %v2534
        %2600 = vmatprep.subr.bf16.mxu0 0
        %2601 = vmatpush1.bf16.msra.mxu0 %v2536
        %2602 = vmatprep.subr.bf16.mxu0 0
        %2603 = vmatpush1.bf16.msra.mxu0 %v2537
        %2604 = vmatprep.subr.bf16.mxu0 0
        %2605 = vmatpush1.bf16.msra.mxu0 %v2538
        %2606 = vmatprep.subr.bf16.mxu0 0
        %2607 = vmatpush1.bf16.msra.mxu0 %v2539
        %2608 = vmatprep.subr.bf16.mxu0 0
        %2609 = vmatpush1.bf16.msra.mxu0 %v2540
        %2610 = vmatprep.subr.bf16.mxu0 0
        %2611 = vmatpush1.bf16.msra.mxu0 %v2541
        %2612 = vmatprep.subr.bf16.mxu0 0
        %2613 = vmatpush1.bf16.msra.mxu0 %v2542
        %2614 = vmatprep.subr.bf16.mxu0 0
        %2615 = vmatpush1.bf16.msra.mxu0 %v2543
        %2616 = vmatprep.subr.bf16.mxu0 0
        %2617 = vmatpush1.bf16.msra.mxu0 %v2544
        %2618 = vmatprep.subr.bf16.mxu0 0
        %2619 = vmatpush1.bf16.msra.mxu0 %v2545
        %2620 = vmatprep.subr.bf16.mxu0 0
        %2621 = vmatpush1.bf16.msra.mxu0 %v2546
        %2622 = vmatprep.subr.bf16.mxu0 0
        %2623 = vmatpush1.bf16.msra.mxu0 %v2547
        %2624 = vmatprep.subr.bf16.mxu0 0
        %2625 = vmatpush1.bf16.msra.mxu0 %v2548
        %2626 = vmatprep.subr.bf16.mxu0 0
        %2627 = vmatpush1.bf16.msra.mxu0 %v2549
        %2628 = vmatprep.subr.bf16.mxu0 0
        %2629 = vmatpush1.bf16.msra.mxu0 %v2550
        %2630 = vmatprep.subr.bf16.mxu0 0
        %2631 = vmatpush1.bf16.msra.mxu0 %v2551
        %2632 = vmatprep.mubr.bf16.mxu0 %v2401
        %2633 = vmatmul.mubr.bf16.gmra.mrb[0].mxu0 %v2400
        %v2634 = vpop.f32.mrb[0].mxu0
        %v2635 = vadd.f32 %v2386, %v2634
        %v2636 = vpop.f32.mrb[0].mxu0
        %v2637 = vpop.f32.mrb[0].mxu0
        %v2638 = vadd.f32 %v2386, %v2637
        %v2639 = vpop.f32.mrb[0].mxu0
        %2640 = vdwg.mxu0
        %2641 = vmatprep.subr.bf16.mxu0 0
        %2642 = vmatpush1.bf16.msra.mxu0 %v2552
        %2643 = vmatprep.subr.bf16.mxu0 0
        %2644 = vmatpush1.bf16.msra.mxu0 %v2553
        %2645 = vmatprep.subr.bf16.mxu0 0
        %2646 = vmatpush1.bf16.msra.mxu0 %v2554
        %2647 = vmatprep.subr.bf16.mxu0 0
        %2648 = vmatpush1.bf16.msra.mxu0 %v2555
        %2649 = vmatprep.subr.bf16.mxu0 0
        %2650 = vmatpush1.bf16.msra.mxu0 %v2556
        %2651 = vmatprep.subr.bf16.mxu0 0
        %2652 = vmatpush1.bf16.msra.mxu0 %v2557
        %2653 = vmatprep.subr.bf16.mxu0 0
        %2654 = vmatpush1.bf16.msra.mxu0 %v2558
        %2655 = vmatprep.subr.bf16.mxu0 0
        %2656 = vmatpush1.bf16.msra.mxu0 %v2559
        %2657 = vmatprep.subr.bf16.mxu0 0
        %2658 = vmatpush1.bf16.msra.mxu0 %v2560
        %2659 = vmatprep.subr.bf16.mxu0 0
        %2660 = vmatpush1.bf16.msra.mxu0 %v2561
        %2661 = vmatprep.subr.bf16.mxu0 0
        %2662 = vmatpush1.bf16.msra.mxu0 %v2562
        %2663 = vmatprep.subr.bf16.mxu0 0
        %2664 = vmatpush1.bf16.msra.mxu0 %v2563
        %2665 = vmatprep.subr.bf16.mxu0 0
        %2666 = vmatpush1.bf16.msra.mxu0 %v2564
        %2667 = vmatprep.subr.bf16.mxu0 0
        %2668 = vmatpush1.bf16.msra.mxu0 %v2565
        %2669 = vmatprep.subr.bf16.mxu0 0
        %2670 = vmatpush1.bf16.msra.mxu0 %v2566
        %2671 = vmatprep.subr.bf16.mxu0 0
        %2672 = vmatpush1.bf16.msra.mxu0 %v2567
        %2673 = vmatprep.mubr.bf16.mxu0 %v2403
        %2674 = vmatmul.mubr.bf16.gmra.mrb[0].mxu0 %v2402
        %v2675 = vpop.f32.mrb[0].mxu0
        %v2676 = vadd.f32 %v2635, %v2675
        %v2677 = vpop.f32.mrb[0].mxu0
        %v2678 = vpop.f32.mrb[0].mxu0
        %v2679 = vadd.f32 %v2638, %v2678
        %v2680 = vpop.f32.mrb[0].mxu0
        %2681 = vdwg.mxu0
        %v2682 = vmul.f32 %v2676, 0.5
        %v2683 = vmul.f32 %v2679, 0.5
        %v2684 = vtanh.pop %v2682
        %v2685 = vtanh.pop %v2683
        %v2686 = vmul.f32 %v2684, 0.5
        %v2687 = vmul.f32 %v2685, 0.5
        %v2688 = vadd.f32 %v2686, 0.5
        %v2689 = vadd.f32 %v2687, 0.5
        %v2690 = vpack.c.bf16 %v2689, %v2688
        %v2692 = vunpack.c.l.b16 %v2690
        %v2693 = vunpack.c.h.b16 %v2690
        %v2694 = vpack.c.b16 %v2692, %v2692
        %v2695 = vpack.c.b16 %v2693, %v2693
        %2698 = vst [vmem:[%s958] sm:$0xf] %v2694
        %2699 = vst [vmem:[%s958 + $0x4] sm:$0xf] %v2695
        %s2700 = sand.u32 %s565, 1
        %s2701 = scalar_lea.sflag [#allocation4], %s2700
        %s2702 = sand.u32 %s565, 1
        %s2703 = smul.addr %s2702, 8
        %s2704 = scalar_lea.vmem [#allocation19], %s2703
        // Predicated region
        $region153: #{tpu_custom_call.1} parent=111 // pred_check
          %p2705 = pneg %p575
        $region154: #{tpu_custom_call.1} parent=111 // pred_check_branch
          %2707 = sbr.rel (%p2705) target = $region156
        $region155: #{tpu_custom_call.1} parent=111 // pred_region
          %s2708 = smul.u32 2, %s49
          %s2710 = ssub.s32 128, 128
          %2711 = vsyncadd %s2701, %s2710
          %s2712 = smul.addr %s2708, 64
          %s2713 = scalar_lea.hbm %s23, %s2712
          %s2714 = sshll.u32 %s2704, 4
          %s2715 = int_to_ptr.vmem [resolvable:$true] %s2714
          %2720 = dma.vmem_to_hbm [thread:$0]  %s2715, 128, %s2713, %s2701, 64, 64, 4
        $region156: #{tpu_custom_call.1} parent=111 // pred_fallthru
          _
      $region112: #{tpu_custom_call.1} parent=5 // pred_fallthru
        _
      %p2721 = scmp.le.s32.totalorder 2, %s44
      // Predicated region
      $region157: #{tpu_custom_call.1} parent=5 // pred_check
        %p2722 = pneg %p2721
      $region158: #{tpu_custom_call.1} parent=5 // pred_check_branch
        %2724 = sbr.rel (%p2722) target = $region160
      $region159: #{tpu_custom_call.1} parent=5 // pred_region
        %s2725 = ssub.s32 %s44, 2
        // Predicated region
        $region161: #{tpu_custom_call.1} parent=159 // pred_check
          %p2726 = pneg %p581
        $region162: #{tpu_custom_call.1} parent=159 // pred_check_branch
          %2728 = sbr.rel (%p2726) target = $region164
        $region163: #{tpu_custom_call.1} parent=159 // pred_region
          %s2729 = sand.u32 %s566, 1
          %s2730 = scalar_lea.sflag [#allocation4], %s2729
          %s2731 = sand.u32 %s566, 1
          %s2732 = smul.addr %s2731, 8
          %s2733 = scalar_lea.vmem [#allocation19], %s2732
          %2734 = dma.done %s2730, 128
        $region164: #{tpu_custom_call.1} parent=159 // pred_fallthru
          _
      $region160: #{tpu_custom_call.1} parent=5 // pred_fallthru
        _
    $region6: #{tpu_custom_call.1} parent=1 // loop_footer
      %s48 = sadd.s32 1, %s44
    $region7: #{tpu_custom_call.1} parent=1 // loop_footer_branch
      %43 = sbr.rel target = $region3
    $region8: #{tpu_custom_call.1} parent=1 // loop_exit
      _
    %2735 = vsyncpa [#allocation3], 1
    %s2736 = scalar_lea.sflag [#allocation3], 1
    %2737 = vsyncpa %s2736, 1
    %2738 = vsyncpa [#allocation6], 1
    %s2739 = scalar_lea.sflag [#allocation6], 1
    %2740 = vsyncpa %s2739, 1
    %2741 = vsyncpa [#allocation9], 1
    %s2742 = scalar_lea.sflag [#allocation9], 1
    %2743 = vsyncpa %s2742, 1
    %2744 = vsyncpa [#allocation12], 1
    %2745 = vsyncpa [#allocation15], 1
    %2746 = vsyncpa [#allocation18], 1
    %2747 = vsyncpa [#allocation4], 1
    %s2748 = scalar_lea.sflag [#allocation4], 1
    %2749 = vsyncpa %s2748, 1

</llo_original>
